<compile_context>
chip_gen: v5e
topology: v5e:2x2
jax: 0.10.0
libtpu: 0.0.40
codegen_flags: <defaults>
</compile_context>

<pallas_src>
import functools
import numpy as np
import jax
import jax.numpy as jnp
from jax.experimental import pallas as pl
from jax.experimental.pallas import tpu as pltpu


# --------------------------- fused Pallas kernel -----------------------------

def _selector_kernel(trg_ref, kv_ref, mask_ref, lng_ref, lnb_ref,
                     wq_ref, wmod_ref, fc_ref, out_ref, att_ref,
                     k_scr, v_scr, *,
                     n_head, d_k, d_v, d_model, guider_counts,
                     low_lens_by_modal, out_pad, att_pad):
    """Whole SelectorModule forward for one batch element (grid=(B,))."""
    f32, bf16 = jnp.float32, jnp.bfloat16
    H, dk, dv = n_head, d_k, d_v
    low_lens = [L for sub in low_lens_by_modal for L in sub]
    Lg = sum(guider_counts)
    Lsum = sum(low_lens)
    Lkv = Lg + Lsum

    trg = trg_ref[...]                                      # (Lt, d_model) f32 — residual
    Lt = trg.shape[0]

    # ---- fused LayerNorm + query projection (bf16 MXU operands, f32 acc) -------
    # 1/temperature is pre-folded into wq host-side.
    mean = jnp.mean(trg, axis=-1, keepdims=True)
    xc = trg - mean
    var = jnp.mean(xc * xc, axis=-1, keepdims=True)         # biased var (torch LayerNorm)
    x = xc * jax.lax.rsqrt(var + f32(1e-6)) * lng_ref[...] + lnb_ref[...]
    q = jnp.dot(x.astype(bf16), wq_ref[...], preferred_element_type=f32)   # (Lt, H*dk)

    # ---- per-modality [g_wk | l_wk | l_wv] projections -------------------------
    # kv_ref rows are host pre-ordered modality-contiguous ([g_i ; low_i] blocks),
    # so each modality is ONE static row slice and ONE MXU dot; results land in
    # the canonical-order VMEM scratch at static row offsets (no concatenates).
    roff = goff = loff = 0
    for i, ng in enumerate(guider_counts):
        lm = sum(low_lens_by_modal[i])
        xi = kv_ref[roff:roff + ng + lm, :]                                  # (ng+lm, d_model) bf16
        yi = jnp.dot(xi, wmod_ref[i], preferred_element_type=f32)            # (ng+lm, 2Hdk+Hdv)
        k_scr[goff:goff + ng, :] = yi[:ng, :H * dk].astype(bf16)             # guider K rows
        k_scr[Lg + loff:Lg + loff + lm, :] = yi[ng:, H * dk:2 * H * dk].astype(bf16)  # low K rows
        v_scr[loff:loff + lm, :] = yi[ng:, 2 * H * dk:].astype(bf16)         # low V rows
        roff += ng + lm
        goff += ng
        loff += lm

    # ---- head-major operands, formed ONCE (everything below is head-batched) ---
    qb = q.astype(bf16)
    k_all = k_scr[...]
    v_all = v_scr[...]
    q_hm = jnp.stack([qb[:, h * dk:(h + 1) * dk] for h in range(H)], axis=0)     # (H, Lt,  dk)
    k_hm = jnp.stack([k_all[:, h * dk:(h + 1) * dk] for h in range(H)], axis=0)  # (H, Lkv, dk)
    v_hm = jnp.stack([v_all[:, h * dv:(h + 1) * dv] for h in range(H)], axis=0)  # (H, Lsum, dv)

    # ---- head-batched scores + single masked_fill (mask arrives as int8) -------
    scores = jnp.einsum('htd,hkd->htk', q_hm, k_hm,
                        preferred_element_type=f32)                              # (H, Lt, Lkv)
    mask_f = mask_ref[...].astype(f32)                                            # (Lt, Lkv)
    neg_mask = jnp.broadcast_to((mask_f == 0)[None, :, :], (H, Lt, Lkv))
    scores = jnp.where(neg_mask, f32(-1e9), scores)

    # ---- guider softmax numerator / denominator (normalisation fused below) ----
    g_sc = scores[:, :, :Lg]
    g_exp = jnp.exp(g_sc - jnp.max(g_sc, axis=-1, keepdims=True))
    g_sum = jnp.sum(g_exp, axis=-1, keepdims=True)                                # (H, Lt, 1)

    # ---- per-segment low softmax (static slices, head-batched) ------------------
    parts = []
    off = Lg
    for j, L in enumerate(low_lens):
        s = scores[:, :, off:off + L]
        e = jnp.exp(s - jnp.max(s, axis=-1, keepdims=True))
        s_sum = jnp.sum(e, axis=-1, keepdims=True)
        # final_att_j = (g_exp_j / g_sum) * (e / s_sum) — one EUP reciprocal each
        parts.append((g_exp[:, :, j:j + 1] * e) *
                     pl.reciprocal(g_sum * s_sum, approx=True))
        off += L
    if att_pad > Lsum:
        parts.append(jnp.zeros((H, Lt, att_pad - Lsum), f32))     # single hoisted pad block
    final_pad = jnp.concatenate(parts, axis=-1)                   # (H, Lt, att_pad)
    att_ref[...] = final_pad.astype(att_ref.dtype)                # lane-dense bf16 store

    # ---- head-batched attention-weighted value sum ------------------------------
    final = final_pad[:, :, :Lsum].astype(bf16)
    o_hm = jnp.einsum('htk,hkd->htd', final, v_hm,
                      preferred_element_type=f32)                                # (H, Lt, dv)
    o = jnp.concatenate([o_hm[h] for h in range(H)], axis=-1)                    # (Lt, H*dv)

    # ---- fused output projection (fc pre-padded to 128 lanes) + residual -------
    if out_pad > d_model:
        res = jnp.concatenate([trg, jnp.zeros((Lt, out_pad - d_model), f32)], axis=-1)
    else:
        res = trg
    # TODO(synk): training-mode dropout (attention + output) is omitted; eval-mode identity only.
    out_ref[...] = jnp.dot(o.astype(bf16), fc_ref[...], preferred_element_type=f32) + res


# --------------------------- one-time parameter prep -------------------------

def prepare_params(params, n_head, d_k, d_v):
    """One-time weight preprocessing (keep OUT of the per-call jit)."""
    d_model = params['w_qs'].shape[0]
    temp = float(d_k) ** 0.5
    n_modals = len(params['g_wk'])
    out_pad = max(128, ((d_model + 127) // 128) * 128)
    wmod = jnp.stack([jnp.concatenate(
        [params['g_wk'][i], params['l_wk'][i], params['l_wv'][i]], axis=1)
        for i in range(n_modals)]).astype(jnp.bfloat16)            # (M, d_model, 2Hdk+Hdv)
    return {
        'ln_g': params['ln_g'].reshape(1, d_model).astype(jnp.float32),
        'ln_b': params['ln_b'].reshape(1, d_model).astype(jnp.float32),
        'wq': (params['w_qs'] * (1.0 / temp)).astype(jnp.bfloat16),  # fold 1/temperature
        'wmod': wmod,
        'fc_pad': jnp.pad(params['fc'],
                          ((0, 0), (0, out_pad - d_model))).astype(jnp.bfloat16),
    }


# --------------------------- wrapper (one pallas_call) -----------------------

@functools.partial(jax.jit, static_argnums=(1, 2, 3))
def selector_forward(prepped, n_head, d_k, d_v, trg_rep, guider_rep, guider_mask,
                     low_rep_list, low_mask_list):
    B, Lt, d_model = trg_rep.shape
    H = n_head

    guider_counts = tuple(len(sub) for sub in low_rep_list)             # modals_num_list
    low_lens_by_modal = tuple(tuple(r.shape[1] for r in sub) for sub in low_rep_list)
    Lg = sum(guider_counts)
    Lsum = sum(sum(s) for s in low_lens_by_modal)
    Lkv = Lg + Lsum
    n_modals = len(guider_counts)
    C = prepped['wmod'].shape[-1]
    OUT_PAD = prepped['fc_pad'].shape[1]
    ATT_PAD = max(128, ((Lsum + 127) // 128) * 128)

    # ---- per-call input prep: modality-contiguous K/V rows, int8 mask ----------
    pieces, goff = [], 0
    for i, sub in enumerate(low_rep_list):
        ng = len(sub)
        pieces.append(guider_rep[:, goff:goff + ng, :])
        pieces.extend(sub)
        goff += ng
    kv_in = jnp.concatenate(pieces, axis=1).astype(jnp.bfloat16)        # (B, Lkv, d_model)
    full_mask = jnp.concatenate(
        [guider_mask] + [m for sub in low_mask_list for m in sub],
        axis=-1).astype(jnp.int8)                                        # (B, Lt, Lkv) int8

    kernel = functools.partial(
        _selector_kernel, n_head=H, d_k=d_k, d_v=d_v, d_model=d_model,
        guider_counts=guider_counts, low_lens_by_modal=low_lens_by_modal,
        out_pad=OUT_PAD, att_pad=ATT_PAD)

    flops = 2 * B * (Lt * d_model * H * d_k + Lkv * d_model * C
                     + H * Lt * Lkv * d_k + H * Lt * Lsum * d_v
                     + Lt * H * d_v * OUT_PAD)
    bytes_accessed = (trg_rep.size * 4 + kv_in.size * 2 + full_mask.size
                      + prepped['wq'].size * 2 + prepped['wmod'].size * 2
                      + prepped['fc_pad'].size * 2 + 2 * d_model * 4
                      + B * Lt * OUT_PAD * 4 + B * H * Lt * ATT_PAD * 2)

    sq = pl.Squeezed()
    out_padded, att_padded = pl.pallas_call(
        kernel,
        grid=(B,),
        in_specs=[
            pl.BlockSpec((sq, Lt, d_model), lambda b: (b, 0, 0)),        # trg / residual (f32)
            pl.BlockSpec((sq, Lkv, d_model), lambda b: (b, 0, 0)),       # modality-ordered K/V input (bf16)
            pl.BlockSpec((sq, Lt, Lkv), lambda b: (b, 0, 0)),            # concatenated masks (int8)
            pl.BlockSpec((1, d_model), lambda b: (0, 0)),                # LayerNorm gamma
            pl.BlockSpec((1, d_model), lambda b: (0, 0)),                # LayerNorm beta
            pl.BlockSpec((d_model, H * d_k), lambda b: (0, 0)),          # w_qs / temperature (bf16)
            pl.BlockSpec((n_modals, d_model, C), lambda b: (0, 0, 0)),   # per-modality [g_wk|l_wk|l_wv]
            pl.BlockSpec((H * d_v, OUT_PAD), lambda b: (0, 0)),          # fc (lane-padded, bf16)
        ],
        out_specs=[
            pl.BlockSpec((sq, Lt, OUT_PAD), lambda b: (b, 0, 0)),
            pl.BlockSpec((sq, H, Lt, ATT_PAD), lambda b: (b, 0, 0, 0)),
        ],
        out_shape=(
            jax.ShapeDtypeStruct((B, Lt, OUT_PAD), jnp.float32),
            jax.ShapeDtypeStruct((B, H, Lt, ATT_PAD), jnp.bfloat16),
        ),
        scratch_shapes=[
            pltpu.VMEM((Lkv, H * d_k), jnp.bfloat16),                    # K scratch (canonical order)
            pltpu.VMEM((Lsum, H * d_v), jnp.bfloat16),                   # V scratch
        ],
        compiler_params=pltpu.CompilerParams(
            dimension_semantics=("parallel",),      # batch axis feeds both v7x TensorCores
            vmem_limit_bytes=32 * 1024 * 1024),
        cost_estimate=pl.CostEstimate(flops=int(flops),
                                      transcendentals=int(B * H * Lt * Lkv),
                                      bytes_accessed=int(bytes_accessed)),
    )(trg_rep, kv_in, full_mask, prepped['ln_g'], prepped['ln_b'],
      prepped['wq'], prepped['wmod'], prepped['fc_pad'])

    out = out_padded[:, :, :d_model]
    final_att = att_padded[:, :, :, :Lsum]          # bf16 (halved writeback); upcast downstream if needed
    return out, final_att


# --------------------------- pure-JAX reference (for verification) -----------

def reference_forward(params, n_head, d_k, d_v, trg_rep, guider_rep, guider_mask,
                      low_rep_list, low_mask_list):
    B, Lt, d_model = trg_rep.shape
    H = n_head
    residual = trg_rep
    mean = trg_rep.mean(-1, keepdims=True)
    var = ((trg_rep - mean) ** 2).mean(-1, keepdims=True)
    x = (trg_rep - mean) / jnp.sqrt(var + 1e-6) * params['ln_g'] + params['ln_b']
    temp = d_k ** 0.5
    q = (x @ params['w_qs']).reshape(B, Lt, H, d_k).transpose(0, 2, 1, 3)

    gk_parts, off = [], 0
    for i, sub in enumerate(low_rep_list):
        n = len(sub)
        gk_parts.append(guider_rep[:, off:off + n, :] @ params['g_wk'][i])
        off += n
    gk = jnp.concatenate(gk_parts, axis=1).reshape(B, -1, H, d_k).transpose(0, 2, 1, 3)
    g_sc = jnp.einsum('bhqd,bhkd->bhqk', q / temp, gk)
    g_sc = jnp.where(guider_mask[:, None] == 0, -1e9, g_sc)
    g_att = jax.nn.softmax(g_sc, axis=-1)

    flat_masks = [m for sub in low_mask_list for m in sub]
    low_atts, low_vs, lens, j = [], [], [], 0
    for i, sub in enumerate(low_rep_list):
        for rep in sub:
            L = rep.shape[1]
            k = (rep @ params['l_wk'][i]).reshape(B, L, H, d_k).transpose(0, 2, 1, 3)
            v = (rep @ params['l_wv'][i]).reshape(B, L, H, d_v).transpose(0, 2, 1, 3)
            sc = jnp.einsum('bhqd,bhkd->bhqk', q / temp, k)
            sc = jnp.where(flat_masks[j][:, None] == 0, -1e9, sc)
            low_atts.append(jax.nn.softmax(sc, axis=-1))
            low_vs.append(v)
            lens.append(L)
            j += 1
    cat_att = jnp.concatenate(low_atts, axis=-1)
    cat_v = jnp.concatenate(low_vs, axis=-2)
    g_expand = jnp.concatenate(
        [jnp.broadcast_to(g_att[..., i:i + 1], g_att.shape[:-1] + (lens[i],))
         for i in range(len(lens))], axis=-1)
    final = g_expand * cat_att
    out = jnp.einsum('bhqk,bhkd->bhqd', final, cat_v).transpose(0, 2, 1, 3).reshape(B, Lt, H * d_v)
    out = out @ params['fc'] + residual
    return out, final


# --------------------------- main --------------------------------------------

if __name__ == "__main__":
    B, Lt, d_model, n_head, d_k, d_v = 2, 8, 32, 2, 8, 8
    modals_num = 2                              # model_config['sub_module_config']['modals_num']
    low_lens = [[8, 4], [6]]                    # per-modality low sub-sequence lengths
    Lg = sum(len(s) for s in low_lens)          # one guider token per low sub-sequence

    keys = iter(jax.random.split(jax.random.PRNGKey(0), 32))

    # inputs
    trg_rep = jax.random.normal(next(keys), (B, Lt, d_model), jnp.float32)
    guider_rep = jax.random.normal(next(keys), (B, Lg, d_model), jnp.float32)
    guider_mask = (jax.random.uniform(next(keys), (B, Lt, Lg)) < 0.85).astype(jnp.float32)
    low_rep_list = [[jax.random.normal(next(keys), (B, L, d_model), jnp.float32) for L in sub]
                    for sub in low_lens]
    low_mask_list = [[(jax.random.uniform(next(keys), (B, Lt, L)) < 0.85).astype(jnp.float32)
                      for L in sub] for sub in low_lens]

    # deterministic parameters (nn.Linear weights stored as (in, out); LayerNorm gamma=1, beta=0)
    def init_w(k, shape):
        return jax.random.normal(k, shape, jnp.float32) * 0.1

    params = {
        'ln_g': jnp.ones((d_model,), jnp.float32),
        'ln_b': jnp.zeros((d_model,), jnp.float32),
        'w_qs': init_w(next(keys), (d_model, n_head * d_k)),
        'g_wk': [init_w(next(keys), (d_model, n_head * d_k)) for _ in range(modals_num)],
        'l_wk': [init_w(next(keys), (d_model, n_head * d_k)) for _ in range(modals_num)],
        'l_wv': [init_w(next(keys), (d_model, n_head * d_v)) for _ in range(modals_num)],
        'fc': init_w(next(keys), (n_head * d_v, d_model)),
    }

    prepped = prepare_params(params, n_head, d_k, d_v)     # one-time weight prep (outside jit)

    out, final_att = selector_forward(prepped, n_head, d_k, d_v, trg_rep, guider_rep,
                                      guider_mask, low_rep_list, low_mask_list)
    out = jax.block_until_ready(out)
    final_att = jax.block_until_ready(final_att)

    ref_out, ref_att = reference_forward(params, n_head, d_k, d_v, trg_rep, guider_rep,
                                         guider_mask, low_rep_list, low_mask_list)
    # tolerance reflects the deliberate bf16 MXU operands (+ approx EUP reciprocal);
    # the f32 reference uses full-precision weights/activations.
    np.testing.assert_allclose(np.asarray(out), np.asarray(ref_out), rtol=2e-2, atol=2e-2)
    np.testing.assert_allclose(np.asarray(final_att).astype(np.float32), np.asarray(ref_att),
                               rtol=2e-2, atol=2e-2)

    print("KERNEL_OK")
</pallas_src>

<mosaic_0001>
module attributes {stable_mosaic.version = 11 : i64} {
  func.func @_selector_kernel(%arg0: i32, %arg1: memref<1x8x32xf32, #tpu.memory_space<vmem>>, %arg2: memref<1x21x32xbf16, #tpu.memory_space<vmem>>, %arg3: memref<1x8x21xi8, #tpu.memory_space<vmem>>, %arg4: memref<1x32xf32, #tpu.memory_space<vmem>>, %arg5: memref<1x32xf32, #tpu.memory_space<vmem>>, %arg6: memref<32x16xbf16, #tpu.memory_space<vmem>>, %arg7: memref<2x32x48xbf16, #tpu.memory_space<vmem>>, %arg8: memref<16x128xbf16, #tpu.memory_space<vmem>>, %arg9: memref<1x8x128xf32, #tpu.memory_space<vmem>>, %arg10: memref<1x2x8x128xbf16, #tpu.memory_space<vmem>>, %arg11: memref<21x16xbf16, #tpu.memory_space<vmem>>, %arg12: memref<18x16xbf16, #tpu.memory_space<vmem>>) attributes {dimension_semantics = [#tpu.dimension_semantics<parallel>], iteration_bounds = array<i64: 2>, scalar_prefetch = 0 : i64, scratch_operands = 2 : i64, tpu.core_type = #tpu.core_type<tc>, window_params = [{transform_indices = @transform_0, window_bounds = array<i64: 1, 8, 32>}, {transform_indices = @transform_1, window_bounds = array<i64: 1, 21, 32>}, {transform_indices = @transform_2, window_bounds = array<i64: 1, 8, 21>}, {pipeline_mode = #tpu.pipeline_mode<synchronous>, transform_indices = @transform_3, window_bounds = array<i64: 1, 32>}, {pipeline_mode = #tpu.pipeline_mode<synchronous>, transform_indices = @transform_4, window_bounds = array<i64: 1, 32>}, {pipeline_mode = #tpu.pipeline_mode<synchronous>, transform_indices = @transform_5, window_bounds = array<i64: 32, 16>}, {pipeline_mode = #tpu.pipeline_mode<synchronous>, transform_indices = @transform_6, window_bounds = array<i64: 2, 32, 48>}, {pipeline_mode = #tpu.pipeline_mode<synchronous>, transform_indices = @transform_7, window_bounds = array<i64: 16, 128>}, {transform_indices = @transform_8, window_bounds = array<i64: 1, 8, 128>}, {transform_indices = @transform_9, window_bounds = array<i64: 1, 2, 8, 128>}]} {
    %c0 = arith.constant 0 : index
    %c0_0 = arith.constant 0 : index
    %c0_1 = arith.constant 0 : index
    %0 = vector.load %arg1[%c0, %c0_0, %c0_1] : memref<1x8x32xf32, #tpu.memory_space<vmem>>, vector<1x8x32xf32>
    %1 = vector.shape_cast %0 : vector<1x8x32xf32> to vector<8x32xf32>
    %cst = arith.constant dense<0.000000e+00> : vector<8xf32>
    %2 = vector.multi_reduction <add>, %1, %cst [1] : vector<8x32xf32> to vector<8xf32>
    %3 = vector.shape_cast %2 : vector<8xf32> to vector<8x1xf32>
    %cst_2 = arith.constant 3.200000e+01 : f32
    %4 = vector.broadcast %cst_2 : f32 to vector<8x1xf32>
    %5 = arith.divf %3, %4 : vector<8x1xf32>
    %6 = vector.broadcast %5 : vector<8x1xf32> to vector<8x32xf32>
    %7 = arith.subf %1, %6 : vector<8x32xf32>
    %8 = arith.mulf %7, %7 : vector<8x32xf32>
    %cst_3 = arith.constant dense<0.000000e+00> : vector<8xf32>
    %9 = vector.multi_reduction <add>, %8, %cst_3 [1] : vector<8x32xf32> to vector<8xf32>
    %10 = vector.shape_cast %9 : vector<8xf32> to vector<8x1xf32>
    %cst_4 = arith.constant 3.200000e+01 : f32
    %11 = vector.broadcast %cst_4 : f32 to vector<8x1xf32>
    %12 = arith.divf %10, %11 : vector<8x1xf32>
    %cst_5 = arith.constant 9.99999997E-7 : f32
    %13 = vector.broadcast %cst_5 : f32 to vector<8x1xf32>
    %14 = arith.addf %12, %13 : vector<8x1xf32>
    %15 = math.rsqrt %14 : vector<8x1xf32>
    %16 = vector.broadcast %15 : vector<8x1xf32> to vector<8x32xf32>
    %17 = arith.mulf %7, %16 : vector<8x32xf32>
    %c0_6 = arith.constant 0 : index
    %c0_7 = arith.constant 0 : index
    %18 = vector.load %arg4[%c0_6, %c0_7] : memref<1x32xf32, #tpu.memory_space<vmem>>, vector<1x32xf32>
    %19 = vector.broadcast %18 : vector<1x32xf32> to vector<8x32xf32>
    %20 = arith.mulf %17, %19 : vector<8x32xf32>
    %c0_8 = arith.constant 0 : index
    %c0_9 = arith.constant 0 : index
    %21 = vector.load %arg5[%c0_8, %c0_9] : memref<1x32xf32, #tpu.memory_space<vmem>>, vector<1x32xf32>
    %22 = vector.broadcast %21 : vector<1x32xf32> to vector<8x32xf32>
    %23 = arith.addf %20, %22 : vector<8x32xf32>
    %24 = arith.truncf %23 : vector<8x32xf32> to vector<8x32xbf16>
    %c0_10 = arith.constant 0 : index
    %c0_11 = arith.constant 0 : index
    %25 = vector.load %arg6[%c0_10, %c0_11] : memref<32x16xbf16, #tpu.memory_space<vmem>>, vector<32x16xbf16>
    %cst_12 = arith.constant dense<0.000000e+00> : vector<8x16xf32>
    %26 = tpu.matmul %24, %25, %cst_12 {dimension_numbers = #tpu.dot_dimension_numbers<[1], [0], [0], [1], [0, 0, 1, 1], [], []>} : vector<8x32xbf16>, vector<32x16xbf16>, vector<8x16xf32> -> vector<8x16xf32>
    %c0_13 = arith.constant 0 : index
    %c0_14 = arith.constant 0 : index
    %c0_15 = arith.constant 0 : index
    %27 = vector.load %arg2[%c0_13, %c0_14, %c0_15] : memref<1x21x32xbf16, #tpu.memory_space<vmem>>, vector<1x14x32xbf16>
    %28 = vector.shape_cast %27 : vector<1x14x32xbf16> to vector<14x32xbf16>
    %c0_16 = arith.constant 0 : index
    %c0_17 = arith.constant 0 : index
    %c0_18 = arith.constant 0 : index
    %29 = vector.load %arg7[%c0_16, %c0_17, %c0_18] : memref<2x32x48xbf16, #tpu.memory_space<vmem>>, vector<1x32x48xbf16>
    %30 = vector.shape_cast %29 : vector<1x32x48xbf16> to vector<32x48xbf16>
    %cst_19 = arith.constant dense<0.000000e+00> : vector<14x48xf32>
    %31 = tpu.matmul %28, %30, %cst_19 {dimension_numbers = #tpu.dot_dimension_numbers<[1], [0], [0], [1], [0, 0, 1, 1], [], []>} : vector<14x32xbf16>, vector<32x48xbf16>, vector<14x48xf32> -> vector<14x48xf32>
    %32 = vector.extract_strided_slice %31 {offsets = [0, 0], sizes = [2, 16], strides = [1, 1]} : vector<14x48xf32> to vector<2x16xf32>
    %33 = arith.truncf %32 : vector<2x16xf32> to vector<2x16xbf16>
    %c0_20 = arith.constant 0 : index
    %c0_21 = arith.constant 0 : index
    %34 = vector.load %arg11[%c0_20, %c0_21] : memref<21x16xbf16, #tpu.memory_space<vmem>>, vector<2x16xbf16>
    tpu.vector_store %arg11[%c0_20, %c0_21], %33 {strides = array<i32>} : memref<21x16xbf16, #tpu.memory_space<vmem>>, vector<2x16xbf16>,
    %35 = vector.extract_strided_slice %31 {offsets = [2, 16], sizes = [12, 16], strides = [1, 1]} : vector<14x48xf32> to vector<12x16xf32>
    %36 = arith.truncf %35 : vector<12x16xf32> to vector<12x16xbf16>
    %c3 = arith.constant 3 : index
    %c0_22 = arith.constant 0 : index
    %37 = vector.load %arg11[%c3, %c0_22] : memref<21x16xbf16, #tpu.memory_space<vmem>>, vector<12x16xbf16>
    tpu.vector_store %arg11[%c3, %c0_22], %36 {strides = array<i32>} : memref<21x16xbf16, #tpu.memory_space<vmem>>, vector<12x16xbf16>,
    %38 = vector.extract_strided_slice %31 {offsets = [2, 32], sizes = [12, 16], strides = [1, 1]} : vector<14x48xf32> to vector<12x16xf32>
    %39 = arith.truncf %38 : vector<12x16xf32> to vector<12x16xbf16>
    %c0_23 = arith.constant 0 : index
    %c0_24 = arith.constant 0 : index
    %40 = vector.load %arg12[%c0_23, %c0_24] : memref<18x16xbf16, #tpu.memory_space<vmem>>, vector<12x16xbf16>
    tpu.vector_store %arg12[%c0_23, %c0_24], %39 {strides = array<i32>} : memref<18x16xbf16, #tpu.memory_space<vmem>>, vector<12x16xbf16>,
    %c0_25 = arith.constant 0 : index
    %c14 = arith.constant 14 : index
    %c0_26 = arith.constant 0 : index
    %41 = vector.load %arg2[%c0_25, %c14, %c0_26] : memref<1x21x32xbf16, #tpu.memory_space<vmem>>, vector<1x7x32xbf16>
    %42 = vector.shape_cast %41 : vector<1x7x32xbf16> to vector<7x32xbf16>
    %c1 = arith.constant 1 : index
    %c0_27 = arith.constant 0 : index
    %c0_28 = arith.constant 0 : index
    %43 = vector.load %arg7[%c1, %c0_27, %c0_28] : memref<2x32x48xbf16, #tpu.memory_space<vmem>>, vector<1x32x48xbf16>
    %44 = vector.shape_cast %43 : vector<1x32x48xbf16> to vector<32x48xbf16>
    %cst_29 = arith.constant dense<0.000000e+00> : vector<7x48xf32>
    %45 = tpu.matmul %42, %44, %cst_29 {dimension_numbers = #tpu.dot_dimension_numbers<[1], [0], [0], [1], [0, 0, 1, 1], [], []>} : vector<7x32xbf16>, vector<32x48xbf16>, vector<7x48xf32> -> vector<7x48xf32>
    %46 = vector.extract_strided_slice %45 {offsets = [0, 0], sizes = [1, 16], strides = [1, 1]} : vector<7x48xf32> to vector<1x16xf32>
    %47 = arith.truncf %46 : vector<1x16xf32> to vector<1x16xbf16>
    %c2 = arith.constant 2 : index
    %c0_30 = arith.constant 0 : index
    %48 = vector.load %arg11[%c2, %c0_30] : memref<21x16xbf16, #tpu.memory_space<vmem>>, vector<1x16xbf16>
    tpu.vector_store %arg11[%c2, %c0_30], %47 {strides = array<i32>} : memref<21x16xbf16, #tpu.memory_space<vmem>>, vector<1x16xbf16>,
    %49 = vector.extract_strided_slice %45 {offsets = [1, 16], sizes = [6, 16], strides = [1, 1]} : vector<7x48xf32> to vector<6x16xf32>
    %50 = arith.truncf %49 : vector<6x16xf32> to vector<6x16xbf16>
    %c15 = arith.constant 15 : index
    %c0_31 = arith.constant 0 : index
    %51 = vector.load %arg11[%c15, %c0_31] : memref<21x16xbf16, #tpu.memory_space<vmem>>, vector<6x16xbf16>
    tpu.vector_store %arg11[%c15, %c0_31], %50 {strides = array<i32>} : memref<21x16xbf16, #tpu.memory_space<vmem>>, vector<6x16xbf16>,
    %52 = vector.extract_strided_slice %45 {offsets = [1, 32], sizes = [6, 16], strides = [1, 1]} : vector<7x48xf32> to vector<6x16xf32>
    %53 = arith.truncf %52 : vector<6x16xf32> to vector<6x16xbf16>
    %c12 = arith.constant 12 : index
    %c0_32 = arith.constant 0 : index
    %54 = vector.load %arg12[%c12, %c0_32] : memref<18x16xbf16, #tpu.memory_space<vmem>>, vector<6x16xbf16>
    tpu.vector_store %arg12[%c12, %c0_32], %53 {strides = array<i32>} : memref<18x16xbf16, #tpu.memory_space<vmem>>, vector<6x16xbf16>,
    %55 = arith.truncf %26 : vector<8x16xf32> to vector<8x16xbf16>
    %c0_33 = arith.constant 0 : index
    %c0_34 = arith.constant 0 : index
    %56 = vector.load %arg11[%c0_33, %c0_34] : memref<21x16xbf16, #tpu.memory_space<vmem>>, vector<21x16xbf16>
    %c0_35 = arith.constant 0 : index
    %c0_36 = arith.constant 0 : index
    %57 = vector.load %arg12[%c0_35, %c0_36] : memref<18x16xbf16, #tpu.memory_space<vmem>>, vector<18x16xbf16>
    %58 = vector.extract_strided_slice %55 {offsets = [0, 0], sizes = [8, 8], strides = [1, 1]} : vector<8x16xbf16> to vector<8x8xbf16>
    %59 = vector.extract_strided_slice %55 {offsets = [0, 8], sizes = [8, 8], strides = [1, 1]} : vector<8x16xbf16> to vector<8x8xbf16>
    %60 = vector.shape_cast %58 : vector<8x8xbf16> to vector<1x8x8xbf16>
    %61 = vector.shape_cast %59 : vector<8x8xbf16> to vector<1x8x8xbf16>
    %62 = tpu.concatenate %60, %61 in 0 : vector<1x8x8xbf16>, vector<1x8x8xbf16> -> vector<2x8x8xbf16>
    %63 = vector.extract_strided_slice %56 {offsets = [0, 0], sizes = [21, 8], strides = [1, 1]} : vector<21x16xbf16> to vector<21x8xbf16>
    %64 = vector.extract_strided_slice %56 {offsets = [0, 8], sizes = [21, 8], strides = [1, 1]} : vector<21x16xbf16> to vector<21x8xbf16>
    %65 = vector.shape_cast %63 : vector<21x8xbf16> to vector<1x21x8xbf16>
    %66 = vector.shape_cast %64 : vector<21x8xbf16> to vector<1x21x8xbf16>
    %67 = tpu.concatenate %65, %66 in 0 : vector<1x21x8xbf16>, vector<1x21x8xbf16> -> vector<2x21x8xbf16>
    %68 = vector.extract_strided_slice %57 {offsets = [0, 0], sizes = [18, 8], strides = [1, 1]} : vector<18x16xbf16> to vector<18x8xbf16>
    %69 = vector.extract_strided_slice %57 {offsets = [0, 8], sizes = [18, 8], strides = [1, 1]} : vector<18x16xbf16> to vector<18x8xbf16>
    %70 = vector.shape_cast %68 : vector<18x8xbf16> to vector<1x18x8xbf16>
    %71 = vector.shape_cast %69 : vector<18x8xbf16> to vector<1x18x8xbf16>
    %72 = tpu.concatenate %70, %71 in 0 : vector<1x18x8xbf16>, vector<1x18x8xbf16> -> vector<2x18x8xbf16>
    "tpu.trace_start"() <{level = 10 : i32, message = "htd,hkd->htk"}> : () -> ()
    %cst_37 = arith.constant dense<0.000000e+00> : vector<2x8x21xf32>
    %73 = tpu.matmul %62, %67, %cst_37 {dimension_numbers = #tpu.dot_dimension_numbers<[2], [2], [1], [1], [0, 0, 0, 1, 1, 1], [0], [0]>} : vector<2x8x8xbf16>, vector<2x21x8xbf16>, vector<2x8x21xf32> -> vector<2x8x21xf32>
    "tpu.trace_stop"() : () -> ()
    %c0_38 = arith.constant 0 : index
    %c0_39 = arith.constant 0 : index
    %c0_40 = arith.constant 0 : index
    %74 = vector.load %arg3[%c0_38, %c0_39, %c0_40] : memref<1x8x21xi8, #tpu.memory_space<vmem>>, vector<1x8x21xi8>
    %75 = vector.shape_cast %74 : vector<1x8x21xi8> to vector<8x21xi8>
    %76 = arith.sitofp %75 : vector<8x21xi8> to vector<8x21xf32>
    %cst_41 = arith.constant 0.000000e+00 : f32
    %77 = vector.broadcast %cst_41 : f32 to vector<8x21xf32>
    %78 = arith.cmpf oeq, %76, %77 : vector<8x21xf32>
    %79 = vector.shape_cast %78 : vector<8x21xi1> to vector<1x8x21xi1>
    %80 = vector.shape_cast %79 : vector<1x8x21xi1> to vector<1x8x21xi1>
    %81 = vector.broadcast %80 : vector<1x8x21xi1> to vector<2x8x21xi1>
    %cst_42 = arith.constant -1.000000e+09 : f32
    %82 = vector.broadcast %cst_42 : f32 to vector<2x8x21xf32>
    %83 = arith.select %81, %82, %73 : vector<2x8x21xi1>, vector<2x8x21xf32>
    %84 = vector.extract_strided_slice %83 {offsets = [0, 0, 0], sizes = [2, 8, 3], strides = [1, 1, 1]} : vector<2x8x21xf32> to vector<2x8x3xf32>
    %cst_43 = arith.constant dense<0xFF800000> : vector<2x8xf32>
    %85 = vector.multi_reduction <maximumf>, %84, %cst_43 [2] : vector<2x8x3xf32> to vector<2x8xf32>
    %86 = vector.shape_cast %85 : vector<2x8xf32> to vector<2x8x1xf32>
    %87 = vector.broadcast %86 : vector<2x8x1xf32> to vector<2x8x3xf32>
    %88 = arith.subf %84, %87 : vector<2x8x3xf32>
    %89 = math.exp %88 : vector<2x8x3xf32>
    %cst_44 = arith.constant dense<0.000000e+00> : vector<2x8xf32>
    %90 = vector.multi_reduction <add>, %89, %cst_44 [2] : vector<2x8x3xf32> to vector<2x8xf32>
    %91 = vector.shape_cast %90 : vector<2x8xf32> to vector<2x8x1xf32>
    %92 = vector.extract_strided_slice %83 {offsets = [0, 0, 3], sizes = [2, 8, 8], strides = [1, 1, 1]} : vector<2x8x21xf32> to vector<2x8x8xf32>
    %cst_45 = arith.constant dense<0xFF800000> : vector<2x8xf32>
    %93 = vector.multi_reduction <maximumf>, %92, %cst_45 [2] : vector<2x8x8xf32> to vector<2x8xf32>
    %94 = vector.shape_cast %93 : vector<2x8xf32> to vector<2x8x1xf32>
    %95 = vector.broadcast %94 : vector<2x8x1xf32> to vector<2x8x8xf32>
    %96 = arith.subf %92, %95 : vector<2x8x8xf32>
    %97 = math.exp %96 : vector<2x8x8xf32>
    %cst_46 = arith.constant dense<0.000000e+00> : vector<2x8xf32>
    %98 = vector.multi_reduction <add>, %97, %cst_46 [2] : vector<2x8x8xf32> to vector<2x8xf32>
    %99 = vector.shape_cast %98 : vector<2x8xf32> to vector<2x8x1xf32>
    %100 = vector.extract_strided_slice %89 {offsets = [0, 0, 0], sizes = [2, 8, 1], strides = [1, 1, 1]} : vector<2x8x3xf32> to vector<2x8x1xf32>
    %101 = vector.broadcast %100 : vector<2x8x1xf32> to vector<2x8x8xf32>
    %102 = arith.mulf %101, %97 : vector<2x8x8xf32>
    %103 = arith.mulf %91, %99 : vector<2x8x1xf32>
    %104 = tpu.reciprocal %103 {approx = true} : vector<2x8x1xf32> -> vector<2x8x1xf32>
    %105 = vector.broadcast %104 : vector<2x8x1xf32> to vector<2x8x8xf32>
    %106 = arith.mulf %102, %105 : vector<2x8x8xf32>
    %107 = vector.extract_strided_slice %83 {offsets = [0, 0, 11], sizes = [2, 8, 4], strides = [1, 1, 1]} : vector<2x8x21xf32> to vector<2x8x4xf32>
    %cst_47 = arith.constant dense<0xFF800000> : vector<2x8xf32>
    %108 = vector.multi_reduction <maximumf>, %107, %cst_47 [2] : vector<2x8x4xf32> to vector<2x8xf32>
    %109 = vector.shape_cast %108 : vector<2x8xf32> to vector<2x8x1xf32>
    %110 = vector.broadcast %109 : vector<2x8x1xf32> to vector<2x8x4xf32>
    %111 = arith.subf %107, %110 : vector<2x8x4xf32>
    %112 = math.exp %111 : vector<2x8x4xf32>
    %cst_48 = arith.constant dense<0.000000e+00> : vector<2x8xf32>
    %113 = vector.multi_reduction <add>, %112, %cst_48 [2] : vector<2x8x4xf32> to vector<2x8xf32>
    %114 = vector.shape_cast %113 : vector<2x8xf32> to vector<2x8x1xf32>
    %115 = vector.extract_strided_slice %89 {offsets = [0, 0, 1], sizes = [2, 8, 1], strides = [1, 1, 1]} : vector<2x8x3xf32> to vector<2x8x1xf32>
    %116 = vector.broadcast %115 : vector<2x8x1xf32> to vector<2x8x4xf32>
    %117 = arith.mulf %116, %112 : vector<2x8x4xf32>
    %118 = arith.mulf %91, %114 : vector<2x8x1xf32>
    %119 = tpu.reciprocal %118 {approx = true} : vector<2x8x1xf32> -> vector<2x8x1xf32>
    %120 = vector.broadcast %119 : vector<2x8x1xf32> to vector<2x8x4xf32>
    %121 = arith.mulf %117, %120 : vector<2x8x4xf32>
    %122 = vector.extract_strided_slice %83 {offsets = [0, 0, 15], sizes = [2, 8, 6], strides = [1, 1, 1]} : vector<2x8x21xf32> to vector<2x8x6xf32>
    %cst_49 = arith.constant dense<0xFF800000> : vector<2x8xf32>
    %123 = vector.multi_reduction <maximumf>, %122, %cst_49 [2] : vector<2x8x6xf32> to vector<2x8xf32>
    %124 = vector.shape_cast %123 : vector<2x8xf32> to vector<2x8x1xf32>
    %125 = vector.broadcast %124 : vector<2x8x1xf32> to vector<2x8x6xf32>
    %126 = arith.subf %122, %125 : vector<2x8x6xf32>
    %127 = math.exp %126 : vector<2x8x6xf32>
    %cst_50 = arith.constant dense<0.000000e+00> : vector<2x8xf32>
    %128 = vector.multi_reduction <add>, %127, %cst_50 [2] : vector<2x8x6xf32> to vector<2x8xf32>
    %129 = vector.shape_cast %128 : vector<2x8xf32> to vector<2x8x1xf32>
    %130 = vector.extract_strided_slice %89 {offsets = [0, 0, 2], sizes = [2, 8, 1], strides = [1, 1, 1]} : vector<2x8x3xf32> to vector<2x8x1xf32>
    %131 = vector.broadcast %130 : vector<2x8x1xf32> to vector<2x8x6xf32>
    %132 = arith.mulf %131, %127 : vector<2x8x6xf32>
    %133 = arith.mulf %91, %129 : vector<2x8x1xf32>
    %134 = tpu.reciprocal %133 {approx = true} : vector<2x8x1xf32> -> vector<2x8x1xf32>
    %135 = vector.broadcast %134 : vector<2x8x1xf32> to vector<2x8x6xf32>
    %136 = arith.mulf %132, %135 : vector<2x8x6xf32>
    %cst_51 = arith.constant 0.000000e+00 : f32
    %137 = vector.broadcast %cst_51 : f32 to vector<2x8x110xf32>
    %138 = tpu.concatenate %106, %121, %136, %137 in 2 : vector<2x8x8xf32>, vector<2x8x4xf32>, vector<2x8x6xf32>, vector<2x8x110xf32> -> vector<2x8x128xf32>
    %139 = arith.truncf %138 : vector<2x8x128xf32> to vector<2x8x128xbf16>
    %c0_52 = arith.constant 0 : index
    %c0_53 = arith.constant 0 : index
    %c0_54 = arith.constant 0 : index
    %c0_55 = arith.constant 0 : index
    %140 = vector.load %arg10[%c0_52, %c0_53, %c0_54, %c0_55] : memref<1x2x8x128xbf16, #tpu.memory_space<vmem>>, vector<1x2x8x128xbf16>
    %141 = vector.shape_cast %140 : vector<1x2x8x128xbf16> to vector<2x8x128xbf16>
    %142 = vector.shape_cast %139 : vector<2x8x128xbf16> to vector<1x2x8x128xbf16>
    tpu.vector_store %arg10[%c0_52, %c0_53, %c0_54, %c0_55], %142 {strides = array<i32>} : memref<1x2x8x128xbf16, #tpu.memory_space<vmem>>, vector<1x2x8x128xbf16>,
    %143 = vector.extract_strided_slice %138 {offsets = [0, 0, 0], sizes = [2, 8, 18], strides = [1, 1, 1]} : vector<2x8x128xf32> to vector<2x8x18xf32>
    %144 = arith.truncf %143 : vector<2x8x18xf32> to vector<2x8x18xbf16>
    "tpu.trace_start"() <{level = 10 : i32, message = "htk,hkd->htd"}> : () -> ()
    %cst_56 = arith.constant dense<0.000000e+00> : vector<2x8x8xf32>
    %145 = tpu.matmul %144, %72, %cst_56 {dimension_numbers = #tpu.dot_dimension_numbers<[2], [1], [1], [2], [0, 0, 0, 1, 1, 2], [0], [0]>} : vector<2x8x18xbf16>, vector<2x18x8xbf16>, vector<2x8x8xf32> -> vector<2x8x8xf32>
    "tpu.trace_stop"() : () -> ()
    %146 = vector.extract_strided_slice %145 {offsets = [0, 0, 0], sizes = [1, 8, 8], strides = [1, 1, 1]} : vector<2x8x8xf32> to vector<1x8x8xf32>
    %147 = vector.shape_cast %146 : vector<1x8x8xf32> to vector<8x8xf32>
    %148 = vector.extract_strided_slice %145 {offsets = [1, 0, 0], sizes = [1, 8, 8], strides = [1, 1, 1]} : vector<2x8x8xf32> to vector<1x8x8xf32>
    %149 = vector.shape_cast %148 : vector<1x8x8xf32> to vector<8x8xf32>
    %150 = tpu.concatenate %147, %149 in 1 : vector<8x8xf32>, vector<8x8xf32> -> vector<8x16xf32>
    %cst_57 = arith.constant 0.000000e+00 : f32
    %151 = vector.broadcast %cst_57 : f32 to vector<8x96xf32>
    %152 = tpu.concatenate %1, %151 in 1 : vector<8x32xf32>, vector<8x96xf32> -> vector<8x128xf32>
    %153 = arith.truncf %150 : vector<8x16xf32> to vector<8x16xbf16>
    %c0_58 = arith.constant 0 : index
    %c0_59 = arith.constant 0 : index
    %154 = vector.load %arg8[%c0_58, %c0_59] : memref<16x128xbf16, #tpu.memory_space<vmem>>, vector<16x128xbf16>
    %cst_60 = arith.constant dense<0.000000e+00> : vector<8x128xf32>
    %155 = tpu.matmul %153, %154, %cst_60 {dimension_numbers = #tpu.dot_dimension_numbers<[1], [0], [0], [1], [0, 0, 1, 1], [], []>} : vector<8x16xbf16>, vector<16x128xbf16>, vector<8x128xf32> -> vector<8x128xf32>
    %156 = arith.addf %155, %152 : vector<8x128xf32>
    %c0_61 = arith.constant 0 : index
    %c0_62 = arith.constant 0 : index
    %c0_63 = arith.constant 0 : index
    %157 = vector.load %arg9[%c0_61, %c0_62, %c0_63] : memref<1x8x128xf32, #tpu.memory_space<vmem>>, vector<1x8x128xf32>
    %158 = vector.shape_cast %157 : vector<1x8x128xf32> to vector<8x128xf32>
    %159 = vector.shape_cast %156 : vector<8x128xf32> to vector<1x8x128xf32>
    tpu.vector_store %arg9[%c0_61, %c0_62, %c0_63], %159 {strides = array<i32>} : memref<1x8x128xf32, #tpu.memory_space<vmem>>, vector<1x8x128xf32>,
    return
  }
  func.func @transform_0(%arg0: i32) -> (i32, i32, i32) {
    %c0_i32 = arith.constant 0 : i32
    %c0_i32_0 = arith.constant 0 : i32
    %c0_i32_1 = arith.constant 0 : i32
    return %arg0, %c0_i32, %c0_i32_0 : i32, i32, i32
  }
  func.func @transform_1(%arg0: i32) -> (i32, i32, i32) {
    %c0_i32 = arith.constant 0 : i32
    %c0_i32_0 = arith.constant 0 : i32
    %c0_i32_1 = arith.constant 0 : i32
    return %arg0, %c0_i32, %c0_i32_0 : i32, i32, i32
  }
  func.func @transform_2(%arg0: i32) -> (i32, i32, i32) {
    %c0_i32 = arith.constant 0 : i32
    %c0_i32_0 = arith.constant 0 : i32
    %c0_i32_1 = arith.constant 0 : i32
    return %arg0, %c0_i32, %c0_i32_0 : i32, i32, i32
  }
  func.func @transform_3(%arg0: i32) -> (i32, i32) {
    %c0_i32 = arith.constant 0 : i32
    %c0_i32_0 = arith.constant 0 : i32
    %c0_i32_1 = arith.constant 0 : i32
    return %c0_i32, %c0_i32_0 : i32, i32
  }
  func.func @transform_4(%arg0: i32) -> (i32, i32) {
    %c0_i32 = arith.constant 0 : i32
    %c0_i32_0 = arith.constant 0 : i32
    %c0_i32_1 = arith.constant 0 : i32
    return %c0_i32, %c0_i32_0 : i32, i32
  }
  func.func @transform_5(%arg0: i32) -> (i32, i32) {
    %c0_i32 = arith.constant 0 : i32
    %c0_i32_0 = arith.constant 0 : i32
    %c0_i32_1 = arith.constant 0 : i32
    return %c0_i32, %c0_i32_0 : i32, i32
  }
  func.func @transform_6(%arg0: i32) -> (i32, i32, i32) {
    %c0_i32 = arith.constant 0 : i32
    %c0_i32_0 = arith.constant 0 : i32
    %c0_i32_1 = arith.constant 0 : i32
    %c0_i32_2 = arith.constant 0 : i32
    return %c0_i32, %c0_i32_0, %c0_i32_1 : i32, i32, i32
  }
  func.func @transform_7(%arg0: i32) -> (i32, i32) {
    %c0_i32 = arith.constant 0 : i32
    %c0_i32_0 = arith.constant 0 : i32
    %c0_i32_1 = arith.constant 0 : i32
    return %c0_i32, %c0_i32_0 : i32, i32
  }
  func.func @transform_8(%arg0: i32) -> (i32, i32, i32) {
    %c0_i32 = arith.constant 0 : i32
    %c0_i32_0 = arith.constant 0 : i32
    %c0_i32_1 = arith.constant 0 : i32
    return %arg0, %c0_i32, %c0_i32_0 : i32, i32, i32
  }
  func.func @transform_9(%arg0: i32) -> (i32, i32, i32, i32) {
    %c0_i32 = arith.constant 0 : i32
    %c0_i32_0 = arith.constant 0 : i32
    %c0_i32_1 = arith.constant 0 : i32
    %c0_i32_2 = arith.constant 0 : i32
    return %arg0, %c0_i32, %c0_i32_0, %c0_i32_1 : i32, i32, i32, i32
  }
}

</mosaic_0001>

<llo_original>
// kernel: selector_forward.1
$region0: #{selector_forward.1}
  #allocation0 [shape = 'u32[]', space=smem, size = 0x4, offset = 0x4, fixed_abs, tag = 'smem constant byte address 0x4 - core index']
  #allocation1 [shape = 'u32[72,128]{1,0:T(1,128)}', space=vmem, size = 0x9000, scoped, tag = 'internal scratch']
  #allocation2 [shape = 'bf16[21,16]{1,0:T(8,128)(2,1)}', space=vmem, size = 0x1800, scoped, tag = 'scratch operand']
  #allocation3 [shape = 'bf16[18,16]{1,0:T(8,128)(2,1)}', space=vmem, size = 0x1800, scoped, tag = 'scratch operand']
  %s0 = inlined_call_operand.vmem [shape: f32[2,8,32], index: 0, kind: input, shape index: {}]
  %s1 = inlined_call_operand.vmem [shape: bf16[2,21,32], index: 1, kind: input, shape index: {}]
  %s2 = inlined_call_operand.vmem [shape: s8[2,8,21], index: 2, kind: input, shape index: {}]
  %s3 = inlined_call_operand.vmem [shape: f32[1,32], index: 3, kind: input, shape index: {}]
  %s4 = inlined_call_operand.vmem [shape: f32[1,32], index: 4, kind: input, shape index: {}]
  %s5 = inlined_call_operand.vmem [shape: bf16[32,16], index: 5, kind: input, shape index: {}]
  %s6 = inlined_call_operand.vmem [shape: bf16[2,32,48], index: 6, kind: input, shape index: {}]
  %s7 = inlined_call_operand.vmem [shape: bf16[16,128], index: 7, kind: input, shape index: {}]
  %s8 = inlined_call_operand.hbm [shape: f32[2,8,128], index: 8, kind: output, shape index: {0}]
  %s9 = inlined_call_operand.hbm [shape: bf16[2,2,8,128], index: 9, kind: output, shape index: {1}]
  %10 = xla_tuple %s8, %s9
  %s11 = sld [smem:[#allocation0]]
  $region73: #{selector_forward.1} parent=0
    _
  %s13 = ssub.s32 1, %s11
  %s14 = scalar_select 0, %s13, %s11
  $region1: #{selector_forward.1} parent=0
    #allocation4 [shape = 'u8[8192]{0}', space=vmem, size = 0x2000, scoped, tag = 'output window, operand 0']
    #allocation5 [shape = 's32[2]{0}', space=sflag, size = 0x8, scoped, tag = 'scoped memory for selector_forward.1']
    #allocation6 [shape = 'u8[8192]{0}', space=vmem, size = 0x2000, scoped, tag = 'output window, operand 1']
    #allocation7 [shape = 's32[2]{0}', space=sflag, size = 0x8, scoped, tag = 'scoped memory for selector_forward.1']
    %15 = vsyncpa [#allocation5], 0
    %s16 = scalar_lea.sflag [#allocation5], 1
    %17 = vsyncpa %s16, 0
    %18 = vsyncpa [#allocation7], 0
    %s19 = scalar_lea.sflag [#allocation7], 1
    %20 = vsyncpa %s19, 0
    loop: start=0, step=1, limit=4
    $region2: #{selector_forward.1} parent=1 // loop_pre_header
      _
    $region3: #{selector_forward.1} parent=1 // loop_header
      %s22 = sphi 0, %s26
      %p23 = scmp.ge.s32.totalorder %s22, 4
      %s32 = sphi 0, %s34
      %s35 = sphi 0, %s32
      %s36 = sphi 0, %s35
      %s52 = sphi 0, %s36
      %s58 = sphi 0, %s60
      %s61 = sphi 0, %s58
      %s62 = sphi 0, %s61
      %s78 = sphi 0, %s62
      %s84 = sphi 0, %s86
      %s87 = sphi 0, %s84
      %s88 = sphi 0, %s87
      %s104 = sphi 0, %s88
      %s108 = sphi 0, %s108
      %s110 = sphi 0, %s108
      %s111 = sphi 0, %s110
      %s125 = sphi 0, %s111
      %s129 = sphi 0, %s129
      %s131 = sphi 0, %s129
      %s132 = sphi 0, %s131
      %s146 = sphi 0, %s132
      %s150 = sphi 0, %s150
      %s152 = sphi 0, %s150
      %s153 = sphi 0, %s152
      %s167 = sphi 0, %s153
      %s171 = sphi 0, %s171
      %s173 = sphi 0, %s171
      %s174 = sphi 0, %s173
      %s188 = sphi 0, %s174
      %s192 = sphi 0, %s192
      %s194 = sphi 0, %s192
      %s195 = sphi 0, %s194
      %s209 = sphi 0, %s195
      %s215 = sphi 0, %s217
      %s218 = sphi 0, %s215
      %s219 = sphi 0, %s218
      %s235 = sphi 0, %s219
      %s241 = sphi 0, %s243
      %s244 = sphi 0, %s241
      %s245 = sphi 0, %s244
      %s261 = sphi 0, %s245
    $region4: #{selector_forward.1} parent=1 // loop_header_branch
      %25 = sbr.rel (%p23) target = $region8
    $region5: #{selector_forward.1} parent=1 // loop_body
      %s27 = ssub.s32 %s22, 1
      %s28 = ssub.s32 %s22, 2
      %s29 = sadd.s32 %s22, 1
      %s30 = ssub.s32 %s22, %s29
      %p31 = scmp.eq.s32.totalorder %s30, 0
      %s33 = sadd.s32 %s32, 1
      %s34 = scalar_select %p31, %s32, %s33
      %p37 = pneg %p31
      %p38 = scmp.eq.s32.totalorder %s22, 1
      %p39 = por %p37, %p38
      %p40 = scmp.ne.s32.totalorder %s32, %s35
      %p41 = scmp.eq.s32.totalorder %s22, 0
      %p42 = por %p40, %p41
      %p43 = scmp.ne.s32.totalorder %s32, %s35
      %p44 = scmp.eq.s32.totalorder %s27, 1
      %p45 = por %p43, %p44
      %p46 = scmp.ne.s32.totalorder %s35, %s36
      %p47 = scmp.eq.s32.totalorder %s27, 0
      %p48 = por %p46, %p47
      %p49 = scmp.ne.s32.totalorder %s35, %s36
      %p50 = scmp.eq.s32.totalorder %s28, 1
      %p51 = por %p49, %p50
      %p53 = scmp.ne.s32.totalorder %s36, %s52
      %p54 = scmp.eq.s32.totalorder %s28, 0
      %p55 = por %p53, %p54
      %s56 = ssub.s32 %s22, %s29
      %p57 = scmp.eq.s32.totalorder %s56, 0
      %s59 = sadd.s32 %s58, 1
      %s60 = scalar_select %p57, %s58, %s59
      %p63 = pneg %p57
      %p64 = scmp.eq.s32.totalorder %s22, 1
      %p65 = por %p63, %p64
      %p66 = scmp.ne.s32.totalorder %s58, %s61
      %p67 = scmp.eq.s32.totalorder %s22, 0
      %p68 = por %p66, %p67
      %p69 = scmp.ne.s32.totalorder %s58, %s61
      %p70 = scmp.eq.s32.totalorder %s27, 1
      %p71 = por %p69, %p70
      %p72 = scmp.ne.s32.totalorder %s61, %s62
      %p73 = scmp.eq.s32.totalorder %s27, 0
      %p74 = por %p72, %p73
      %p75 = scmp.ne.s32.totalorder %s61, %s62
      %p76 = scmp.eq.s32.totalorder %s28, 1
      %p77 = por %p75, %p76
      %p79 = scmp.ne.s32.totalorder %s62, %s78
      %p80 = scmp.eq.s32.totalorder %s28, 0
      %p81 = por %p79, %p80
      %s82 = ssub.s32 %s22, %s29
      %p83 = scmp.eq.s32.totalorder %s82, 0
      %s85 = sadd.s32 %s84, 1
      %s86 = scalar_select %p83, %s84, %s85
      %p89 = pneg %p83
      %p90 = scmp.eq.s32.totalorder %s22, 1
      %p91 = por %p89, %p90
      %p92 = scmp.ne.s32.totalorder %s84, %s87
      %p93 = scmp.eq.s32.totalorder %s22, 0
      %p94 = por %p92, %p93
      %p95 = scmp.ne.s32.totalorder %s84, %s87
      %p96 = scmp.eq.s32.totalorder %s27, 1
      %p97 = por %p95, %p96
      %p98 = scmp.ne.s32.totalorder %s87, %s88
      %p99 = scmp.eq.s32.totalorder %s27, 0
      %p100 = por %p98, %p99
      %p101 = scmp.ne.s32.totalorder %s87, %s88
      %p102 = scmp.eq.s32.totalorder %s28, 1
      %p103 = por %p101, %p102
      %p105 = scmp.ne.s32.totalorder %s88, %s104
      %p106 = scmp.eq.s32.totalorder %s28, 0
      %p107 = por %p105, %p106
      %s109 = sadd.s32 %s108, 1
      %p112 = scmp.eq.s32.totalorder %s22, 1
      %p113 = scmp.ne.s32.totalorder %s108, %s110
      %p114 = scmp.eq.s32.totalorder %s22, 0
      %p115 = por %p113, %p114
      %p116 = scmp.ne.s32.totalorder %s108, %s110
      %p117 = scmp.eq.s32.totalorder %s27, 1
      %p118 = por %p116, %p117
      %p119 = scmp.ne.s32.totalorder %s110, %s111
      %p120 = scmp.eq.s32.totalorder %s27, 0
      %p121 = por %p119, %p120
      %p122 = scmp.ne.s32.totalorder %s110, %s111
      %p123 = scmp.eq.s32.totalorder %s28, 1
      %p124 = por %p122, %p123
      %p126 = scmp.ne.s32.totalorder %s111, %s125
      %p127 = scmp.eq.s32.totalorder %s28, 0
      %p128 = por %p126, %p127
      %s130 = sadd.s32 %s129, 1
      %p133 = scmp.eq.s32.totalorder %s22, 1
      %p134 = scmp.ne.s32.totalorder %s129, %s131
      %p135 = scmp.eq.s32.totalorder %s22, 0
      %p136 = por %p134, %p135
      %p137 = scmp.ne.s32.totalorder %s129, %s131
      %p138 = scmp.eq.s32.totalorder %s27, 1
      %p139 = por %p137, %p138
      %p140 = scmp.ne.s32.totalorder %s131, %s132
      %p141 = scmp.eq.s32.totalorder %s27, 0
      %p142 = por %p140, %p141
      %p143 = scmp.ne.s32.totalorder %s131, %s132
      %p144 = scmp.eq.s32.totalorder %s28, 1
      %p145 = por %p143, %p144
      %p147 = scmp.ne.s32.totalorder %s132, %s146
      %p148 = scmp.eq.s32.totalorder %s28, 0
      %p149 = por %p147, %p148
      %s151 = sadd.s32 %s150, 1
      %p154 = scmp.eq.s32.totalorder %s22, 1
      %p155 = scmp.ne.s32.totalorder %s150, %s152
      %p156 = scmp.eq.s32.totalorder %s22, 0
      %p157 = por %p155, %p156
      %p158 = scmp.ne.s32.totalorder %s150, %s152
      %p159 = scmp.eq.s32.totalorder %s27, 1
      %p160 = por %p158, %p159
      %p161 = scmp.ne.s32.totalorder %s152, %s153
      %p162 = scmp.eq.s32.totalorder %s27, 0
      %p163 = por %p161, %p162
      %p164 = scmp.ne.s32.totalorder %s152, %s153
      %p165 = scmp.eq.s32.totalorder %s28, 1
      %p166 = por %p164, %p165
      %p168 = scmp.ne.s32.totalorder %s153, %s167
      %p169 = scmp.eq.s32.totalorder %s28, 0
      %p170 = por %p168, %p169
      %s172 = sadd.s32 %s171, 1
      %p175 = scmp.eq.s32.totalorder %s22, 1
      %p176 = scmp.ne.s32.totalorder %s171, %s173
      %p177 = scmp.eq.s32.totalorder %s22, 0
      %p178 = por %p176, %p177
      %p179 = scmp.ne.s32.totalorder %s171, %s173
      %p180 = scmp.eq.s32.totalorder %s27, 1
      %p181 = por %p179, %p180
      %p182 = scmp.ne.s32.totalorder %s173, %s174
      %p183 = scmp.eq.s32.totalorder %s27, 0
      %p184 = por %p182, %p183
      %p185 = scmp.ne.s32.totalorder %s173, %s174
      %p186 = scmp.eq.s32.totalorder %s28, 1
      %p187 = por %p185, %p186
      %p189 = scmp.ne.s32.totalorder %s174, %s188
      %p190 = scmp.eq.s32.totalorder %s28, 0
      %p191 = por %p189, %p190
      %s193 = sadd.s32 %s192, 1
      %p196 = scmp.eq.s32.totalorder %s22, 1
      %p197 = scmp.ne.s32.totalorder %s192, %s194
      %p198 = scmp.eq.s32.totalorder %s22, 0
      %p199 = por %p197, %p198
      %p200 = scmp.ne.s32.totalorder %s192, %s194
      %p201 = scmp.eq.s32.totalorder %s27, 1
      %p202 = por %p200, %p201
      %p203 = scmp.ne.s32.totalorder %s194, %s195
      %p204 = scmp.eq.s32.totalorder %s27, 0
      %p205 = por %p203, %p204
      %p206 = scmp.ne.s32.totalorder %s194, %s195
      %p207 = scmp.eq.s32.totalorder %s28, 1
      %p208 = por %p206, %p207
      %p210 = scmp.ne.s32.totalorder %s195, %s209
      %p211 = scmp.eq.s32.totalorder %s28, 0
      %p212 = por %p210, %p211
      %s213 = ssub.s32 %s22, %s29
      %p214 = scmp.eq.s32.totalorder %s213, 0
      %s216 = sadd.s32 %s215, 1
      %s217 = scalar_select %p214, %s215, %s216
      %p220 = pneg %p214
      %p221 = scmp.eq.s32.totalorder %s22, 1
      %p222 = por %p220, %p221
      %p223 = scmp.ne.s32.totalorder %s215, %s218
      %p224 = scmp.eq.s32.totalorder %s22, 0
      %p225 = por %p223, %p224
      %p226 = scmp.ne.s32.totalorder %s215, %s218
      %p227 = scmp.eq.s32.totalorder %s27, 1
      %p228 = por %p226, %p227
      %p229 = scmp.ne.s32.totalorder %s218, %s219
      %p230 = scmp.eq.s32.totalorder %s27, 0
      %p231 = por %p229, %p230
      %p232 = scmp.ne.s32.totalorder %s218, %s219
      %p233 = scmp.eq.s32.totalorder %s28, 1
      %p234 = por %p232, %p233
      %p236 = scmp.ne.s32.totalorder %s219, %s235
      %p237 = scmp.eq.s32.totalorder %s28, 0
      %p238 = por %p236, %p237
      %s239 = ssub.s32 %s22, %s29
      %p240 = scmp.eq.s32.totalorder %s239, 0
      %s242 = sadd.s32 %s241, 1
      %s243 = scalar_select %p240, %s241, %s242
      %p246 = pneg %p240
      %p247 = scmp.eq.s32.totalorder %s22, 1
      %p248 = por %p246, %p247
      %p249 = scmp.ne.s32.totalorder %s241, %s244
      %p250 = scmp.eq.s32.totalorder %s22, 0
      %p251 = por %p249, %p250
      %p252 = scmp.ne.s32.totalorder %s241, %s244
      %p253 = scmp.eq.s32.totalorder %s27, 1
      %p254 = por %p252, %p253
      %p255 = scmp.ne.s32.totalorder %s244, %s245
      %p256 = scmp.eq.s32.totalorder %s27, 0
      %p257 = por %p255, %p256
      %p258 = scmp.ne.s32.totalorder %s244, %s245
      %p259 = scmp.eq.s32.totalorder %s28, 1
      %p260 = por %p258, %p259
      %p262 = scmp.ne.s32.totalorder %s245, %s261
      %p263 = scmp.eq.s32.totalorder %s28, 0
      %p264 = por %p262, %p263
      %p265 = scmp.le.s32.totalorder 1, %s22
      %p266 = scmp.lt.s32.totalorder %s22, 3
      %p267 = pnand %p265, %p266
      %p268 = pneg %p267
      // Predicated region
      $region9: #{selector_forward.1} parent=5 // pred_check
        _
      $region10: #{selector_forward.1} parent=5 // pred_check_branch
        %270 = sbr.rel (%p267) target = $region12
      $region11: #{selector_forward.1} parent=5 // pred_region
        %s271 = ssub.s32 %s22, 1
        // Predicated region
        $region13: #{selector_forward.1} parent=11 // pred_check
          %p272 = pneg %p121
        $region14: #{selector_forward.1} parent=11 // pred_check_branch
          %274 = sbr.rel (%p272) target = $region16
        $region15: #{selector_forward.1} parent=11 // pred_region
          _
        $region16: #{selector_forward.1} parent=11 // pred_fallthru
          _
        // Predicated region
        $region17: #{selector_forward.1} parent=11 // pred_check
          %p275 = pneg %p142
        $region18: #{selector_forward.1} parent=11 // pred_check_branch
          %277 = sbr.rel (%p275) target = $region20
        $region19: #{selector_forward.1} parent=11 // pred_region
          _
        $region20: #{selector_forward.1} parent=11 // pred_fallthru
          _
        // Predicated region
        $region21: #{selector_forward.1} parent=11 // pred_check
          %p278 = pneg %p163
        $region22: #{selector_forward.1} parent=11 // pred_check_branch
          %280 = sbr.rel (%p278) target = $region24
        $region23: #{selector_forward.1} parent=11 // pred_region
          _
        $region24: #{selector_forward.1} parent=11 // pred_fallthru
          _
        // Predicated region
        $region25: #{selector_forward.1} parent=11 // pred_check
          %p281 = pneg %p184
        $region26: #{selector_forward.1} parent=11 // pred_check_branch
          %283 = sbr.rel (%p281) target = $region28
        $region27: #{selector_forward.1} parent=11 // pred_region
          _
        $region28: #{selector_forward.1} parent=11 // pred_fallthru
          _
        // Predicated region
        $region29: #{selector_forward.1} parent=11 // pred_check
          %p284 = pneg %p205
        $region30: #{selector_forward.1} parent=11 // pred_check_branch
          %286 = sbr.rel (%p284) target = $region32
        $region31: #{selector_forward.1} parent=11 // pred_region
          _
        $region32: #{selector_forward.1} parent=11 // pred_fallthru
          _
      $region12: #{selector_forward.1} parent=5 // pred_fallthru
        _
      %p287 = scmp.lt.s32.totalorder %s22, 2
      // Predicated region
      $region33: #{selector_forward.1} parent=5 // pred_check
        %p288 = pneg %p287
      $region34: #{selector_forward.1} parent=5 // pred_check_branch
        %290 = sbr.rel (%p288) target = $region36
      $region35: #{selector_forward.1} parent=5 // pred_region
        // Predicated region
        $region37: #{selector_forward.1} parent=35 // pred_check
          %p291 = pneg %p42
        $region38: #{selector_forward.1} parent=35 // pred_check_branch
          %293 = sbr.rel (%p291) target = $region40
        $region39: #{selector_forward.1} parent=35 // pred_region
          %p294 = scmp.lt.s32.totalorder %s22, 1
          %s295 = scalar_select %p294, %s22, 1
          %s296 = smul.addr %s295, 8
          %s297 = scalar_lea.vmem %s0, %s296
        $region40: #{selector_forward.1} parent=35 // pred_fallthru
          _
        // Predicated region
        $region41: #{selector_forward.1} parent=35 // pred_check
          %p298 = pneg %p68
        $region42: #{selector_forward.1} parent=35 // pred_check_branch
          %300 = sbr.rel (%p298) target = $region44
        $region43: #{selector_forward.1} parent=35 // pred_region
          %p301 = scmp.lt.s32.totalorder %s22, 1
          %s302 = scalar_select %p301, %s22, 1
          %s303 = smul.addr %s302, 3
          %s304 = smul.addr %s303, 4
          %s305 = scalar_lea.vmem %s1, %s304
        $region44: #{selector_forward.1} parent=35 // pred_fallthru
          _
        // Predicated region
        $region45: #{selector_forward.1} parent=35 // pred_check
          %p306 = pneg %p94
        $region46: #{selector_forward.1} parent=35 // pred_check_branch
          %308 = sbr.rel (%p306) target = $region48
        $region47: #{selector_forward.1} parent=35 // pred_region
          %p309 = scmp.lt.s32.totalorder %s22, 1
          %s310 = scalar_select %p309, %s22, 1
          %s311 = smul.addr %s310, 2
          %s312 = scalar_lea.vmem %s2, %s311
        $region48: #{selector_forward.1} parent=35 // pred_fallthru
          _
      $region36: #{selector_forward.1} parent=5 // pred_fallthru
        _
      %p313 = scmp.le.s32.totalorder 1, %s22
      %p314 = scmp.lt.s32.totalorder %s22, 3
      %p315 = pnand %p313, %p314
      %p316 = pneg %p315
      // Predicated region
      $region49: #{selector_forward.1} parent=5 // pred_check
        _
      $region50: #{selector_forward.1} parent=5 // pred_check_branch
        %318 = sbr.rel (%p315) target = $region52
      $region51: #{selector_forward.1} parent=5 // pred_region
        %s319 = ssub.s32 %s22, 1
        %p320 = scmp.lt.s32.totalorder %s27, 1
        %s321 = scalar_select %p320, %s27, 1
        %s322 = smul.addr %s321, 8
        %s323 = scalar_lea.vmem %s0, %s322
        %p324 = pneg %p48
        %p325 = pneg %p45
        %p326 = scmp.lt.s32.totalorder %s27, 1
        %s327 = scalar_select %p326, %s27, 1
        %s328 = smul.addr %s327, 3
        %s329 = smul.addr %s328, 4
        %s330 = scalar_lea.vmem %s1, %s329
        %p331 = pneg %p74
        %p332 = pneg %p71
        %p333 = scmp.lt.s32.totalorder %s27, 1
        %s334 = scalar_select %p333, %s27, 1
        %s335 = smul.addr %s334, 2
        %s336 = scalar_lea.vmem %s2, %s335
        %p337 = pneg %p100
        %p338 = pneg %p97
        %p339 = pneg %p121
        %p340 = pneg %p118
        %p341 = pneg %p142
        %p342 = pneg %p139
        %p343 = pneg %p163
        %p344 = pneg %p160
        %p345 = pneg %p184
        %p346 = pneg %p181
        %p347 = pneg %p205
        %p348 = pneg %p202
        %p349 = pneg %p231
        %p350 = pneg %p228
        %s351 = sand.u32 %s218, 1
        %s352 = scalar_lea.sflag [#allocation5], %s351
        %s353 = sand.u32 %s218, 1
        %s354 = smul.addr %s353, 8
        %s355 = scalar_lea.vmem [#allocation4], %s354
        %p356 = pneg %p257
        %p357 = pneg %p254
        %s358 = sand.u32 %s244, 1
        %s359 = scalar_lea.sflag [#allocation7], %s358
        %s360 = sand.u32 %s244, 1
        %s361 = smul.addr %s360, 8
        %s362 = scalar_lea.vmem [#allocation6], %s361
        %p363 = scmp.lt.s32.totalorder %s27, 1
        %s364 = scalar_select %p363, %s27, 1
        %s365 = smul.addr %s364, 8
        %s366 = scalar_lea.vmem %s0, %s365
        %p367 = scmp.lt.s32.totalorder %s27, 1
        %s368 = scalar_select %p367, %s27, 1
        %s369 = smul.addr %s368, 3
        %s370 = smul.addr %s369, 4
        %s371 = scalar_lea.vmem %s1, %s370
        %p372 = scmp.lt.s32.totalorder %s27, 1
        %s373 = scalar_select %p372, %s27, 1
        %s374 = smul.addr %s373, 2
        %s375 = scalar_lea.vmem %s2, %s374
        %v377 = vld [vmem:[%s366] sm:$0xff]
        %vm378 = vcmask 261120
        %v379 = vsel %vm378, %v377, 0.0
        %380 = vadd.xlane.f32.xlu0 %v379
        %v381 = vpop.xlane.xlu0 %380
        %v382 = vrcp.pop 32.0
        %v383 = vmul.f32 32.0, %v382
        %v384 = vsub.f32 1.0, %v383
        %v385 = vmul.f32 %v382, %v384
        %v386 = vadd.f32 %v382, %v385
        %vm387 = vweird.f32 %v382
        %v388 = vsel %vm387, %v382, %v386
        %v389 = vmul.f32 %v381, %v388
        %v390 = vsub.f32 %v377, %v389
        %v391 = vmul.f32 %v390, %v390
        %v392 = vsel %vm378, %v391, 0.0
        %393 = vadd.xlane.f32.xlu0 %v392
        %v394 = vpop.xlane.xlu0 %393
        %v395 = vmul.f32 %v394, %v388
        %v396 = vadd.f32 %v395, 1e-06
        %v397 = vrsqrt.pop %v396
        %v398 = vmul.f32 %v397, %v396
        %v399 = vmul.f32 %v398, %v397
        %v400 = vmul.f32 0.5, %v399
        %v401 = vsub.f32 1.5, %v400
        %v402 = vmul.f32 %v397, %v401
        %vm403 = vweird.f32 %v396
        %vm404 = vweird.f32 %v397
        %vm405 = vmor %vm403, %vm404
        %v406 = vsel %vm405, %v397, %v402
        %v407 = vmul.f32 %v390, %v406
        %v408 = vld [vmem:[%s3] sm:$0x1]
        %v410 = vperm.slane %v408, 0
        %v412 = vmul.f32 %v407, %v410
        %v413 = vld [vmem:[%s4] sm:$0x1]
        %v415 = vperm.slane %v413, 0
        %v417 = vadd.f32 %v412, %v415
        %v418 = vpack.c.bf16 %v417, %v417
        %v419 = vld [vmem:[%s5] sm:$0xf]
        %v420 = vld [vmem:[%s5 + $0x4] sm:$0xf]
        %v421 = vld [vmem:[%s5 + $0x8] sm:$0xf]
        %v422 = vld [vmem:[%s5 + $0xc] sm:$0xf]
        %v427 = vunpack.c.l.b16 %v419
        %v428 = vunpack.c.l.b16 %v420
        %v429 = vunpack.c.l.b16 %v421
        %v430 = vunpack.c.l.b16 %v422
        %v431 = vpack.c.b16 %v428, %v427
        %v432 = vpack.c.b16 %v430, %v429
        %v436 = vsel %vm378, %v418, 0
        %438 = vmatpush.bf16.msra.mxu0 0
        %439 = vmatpush.bf16.msra.mxu0 0
        %440 = vmatpush.bf16.msra.mxu0 0
        %441 = vmatpush.bf16.msra.mxu0 0
        %442 = vmatpush.bf16.msra.mxu0 0
        %443 = vmatpush.bf16.msra.mxu0 0
        %444 = vmatpush.bf16.msra.mxu0 %v432
        %445 = vmatpush.bf16.msra.mxu0 %v431
        %446 = vmatmul.bf16.gmra.mxu0 %v436
        %v447 = vpop.f32.mrf.mxu0
        %v448 = vadd.f32 0.0, %v447
        %v449 = vpop.f32.mrf.mxu0
        %450 = vdwg.mxu0
        %v451 = vld [vmem:[%s371] sm:$0xf]
        %v452 = vld [vmem:[%s371 + $0x4] sm:$0x7]
        %v453 = vld [vmem:[%s6] sm:$0xf]
        %v454 = vld [vmem:[%s6 + $0x4] sm:$0xf]
        %v455 = vld [vmem:[%s6 + $0x8] sm:$0xf]
        %v456 = vld [vmem:[%s6 + $0xc] sm:$0xf]
        %v459 = vunpack.c.l.b16 %v451
        %v460 = vunpack.c.l.b16 %v452
        %v461 = vpack.c.b16 %v460, %v459
        %v466 = vunpack.c.l.b16 %v453
        %v467 = vunpack.c.l.b16 %v454
        %v468 = vunpack.c.l.b16 %v455
        %v469 = vunpack.c.l.b16 %v456
        %v470 = vpack.c.b16 %v467, %v466
        %v471 = vpack.c.b16 %v469, %v468
        %v475 = vsel %vm378, %v461, 0
        %477 = vmatpush.bf16.msra.mxu0 0
        %478 = vmatpush.bf16.msra.mxu0 0
        %479 = vmatpush.bf16.msra.mxu0 0
        %480 = vmatpush.bf16.msra.mxu0 0
        %481 = vmatpush.bf16.msra.mxu0 0
        %482 = vmatpush.bf16.msra.mxu0 0
        %483 = vmatpush.bf16.msra.mxu0 %v471
        %484 = vmatpush.bf16.msra.mxu0 %v470
        %485 = vmatmul.bf16.gmra.mxu0 %v475
        %v486 = vpop.f32.mrf.mxu0
        %v487 = vadd.f32 0.0, %v486
        %v488 = vpop.f32.mrf.mxu0
        %v489 = vadd.f32 0.0, %v488
        %490 = vdwg.mxu0
        %v491 = vpack.c.bf16 %v487, %v487
        %vm492 = vcmask 122880
        %493 = vst.msk [vmem:[#allocation2] sm:$0x1] %vm492, %v491
        %v494 = vpack.c.bf16 %v489, %v489
        %vm495 = vsmask.f32 256
        %vm496 = vsmask.f32 4368
        %vm497 = vmor %vm495, %vm496
        %v499 = vshrl.u32 %v491, 16
        %v501 = vrot.slane %v499, 7
        %v502 = vshll.u32 %v491, 16
        %v504 = vor.u32 %v501, %v502
        %v505 = vrot.slane %v501, 4
        %v507 = vshrl.u32 %v494, 16
        %v509 = vrot.slane %v507, 7
        %v510 = vshll.u32 %v494, 16
        %v512 = vor.u32 %v509, %v510
        %v513 = vsel %vm497, %v505, %v512
        %514 = vrot.lane.b32.xlu0 %v504, 112
        %v515 = vpop.permute.xlu0 %514
        %516 = vrot.lane.b32.xlu0 %v513, 112
        %v517 = vpop.permute.xlu0 %516
        %vm520 = vcmask 125953
        %vm521 = vsmask.f32 7942
        %vm522 = vmand %vm520, %vm521
        %v523 = vld [vmem:[#allocation2] sm:$0xe]
        %v524 = vsel %vm522, %v515, %v523
        %525 = vst [vmem:[#allocation2] sm:$0xe] %v524
        %vm526 = vcmask 125952
        %vm527 = vsmask.f32 3328
        %vm528 = vmand %vm526, %vm527
        %v529 = vld [vmem:[#allocation2 + $0x4] sm:$0xf]
        %v530 = vsel %vm528, %v517, %v529
        %531 = vst [vmem:[#allocation2 + $0x4] sm:$0xf] %v530
        %vm534 = vcmask 1042432
        %vm535 = vcmask 1046532
        %vm536 = vmor %vm534, %vm535
        %v537 = vrot.slane %v491, 5
        %v538 = vrot.slane %v537, 4
        %v539 = vrot.slane %v494, 5
        %v540 = vsel %vm536, %v538, %v539
        %v541 = vrot.slane %v539, 4
        %542 = vrot.lane.b32.xlu0 %v540, 96
        %v543 = vpop.permute.xlu0 %542
        %544 = vrot.lane.b32.xlu0 %v541, 96
        %v545 = vpop.permute.xlu0 %544
        %vm548 = vcmask 125952
        %549 = vst.msk [vmem:[#allocation3] sm:$0xf] %vm548, %v543
        %vm550 = vcmask 123904
        %551 = vst.msk [vmem:[#allocation3 + $0x4] sm:$0x3] %vm550, %v545
        %v552 = vld [vmem:[%s371 + $0x4] sm:$0x8]
        %v553 = vld [vmem:[%s371 + $0x8] sm:$0x7]
        %s554 = scalar_lea.vmem %s6, 16
        %v555 = vld [vmem:[%s554] sm:$0xf]
        %v556 = vld [vmem:[%s554 + $0x4] sm:$0xf]
        %v557 = vld [vmem:[%s554 + $0x8] sm:$0xf]
        %v558 = vld [vmem:[%s554 + $0xc] sm:$0xf]
        %v561 = vunpack.c.l.b16 %v552
        %v562 = vunpack.c.l.b16 %v553
        %v563 = vpack.c.b16 %v562, %v561
        %v564 = vrot.slane %v563, 3
        %v569 = vunpack.c.l.b16 %v555
        %v570 = vunpack.c.l.b16 %v556
        %v571 = vunpack.c.l.b16 %v557
        %v572 = vunpack.c.l.b16 %v558
        %v573 = vpack.c.b16 %v570, %v569
        %v574 = vpack.c.b16 %v572, %v571
        %v578 = vsel %vm378, %v564, 0
        %580 = vmatpush.bf16.msra.mxu0 0
        %581 = vmatpush.bf16.msra.mxu0 0
        %582 = vmatpush.bf16.msra.mxu0 0
        %583 = vmatpush.bf16.msra.mxu0 0
        %584 = vmatpush.bf16.msra.mxu0 0
        %585 = vmatpush.bf16.msra.mxu0 0
        %586 = vmatpush.bf16.msra.mxu0 %v574
        %587 = vmatpush.bf16.msra.mxu0 %v573
        %588 = vmatmul.bf16.gmra.mxu0 %v578
        %v589 = vpop.f32.mrf.mxu0
        %v590 = vadd.f32 0.0, %v589
        %v591 = vpop.f32.mrf.mxu0
        %592 = vdwg.mxu0
        %v593 = vpack.c.bf16 %v590, %v590
        %v595 = vrot.slane %v593, 7
        %vm597 = vcmask 123905
        %vm598 = vsmask.f32 1280
        %vm599 = vmand %vm597, %vm598
        %v600 = vld [vmem:[#allocation2] sm:$0x2]
        %v601 = vsel %vm599, %v595, %v600
        %602 = vst [vmem:[#allocation2] sm:$0x2] %v601
        %v603 = vrot.slane %v593, 5
        %v604 = vrot.slane %v603, 4
        %605 = vrot.lane.b32.xlu0 %v603, 112
        %v606 = vpop.permute.xlu0 %605
        %607 = vrot.lane.b32.xlu0 %v604, 112
        %v608 = vpop.permute.xlu0 %607
        %vm611 = vcmask 125955
        %vm612 = vsmask.f32 7950
        %vm613 = vmand %vm611, %vm612
        %v614 = vld [vmem:[#allocation2 + $0x4] sm:$0x8]
        %v615 = vsel %vm613, %v606, %v614
        %616 = vst [vmem:[#allocation2 + $0x4] sm:$0x8] %v615
        %vm617 = vcmask 124928
        %vm618 = vsmask.f32 2304
        %vm619 = vmand %vm617, %vm618
        %v620 = vld [vmem:[#allocation2 + $0x8] sm:$0x7]
        %v621 = vsel %vm619, %v608, %v620
        %622 = vst [vmem:[#allocation2 + $0x8] sm:$0x7] %v621
        %v624 = vshrl.u32 %v593, 16
        %v626 = vrot.slane %v624, 6
        %v627 = vshll.u32 %v593, 16
        %v629 = vrot.slane %v627, 7
        %v630 = vor.u32 %v626, %v629
        %v631 = vrot.slane %v630, 4
        %632 = vrot.lane.b32.xlu0 %v630, 96
        %v633 = vpop.permute.xlu0 %632
        %634 = vrot.lane.b32.xlu0 %v631, 96
        %v635 = vpop.permute.xlu0 %634
        %vm638 = vcmask 125954
        %639 = vst.msk [vmem:[#allocation3 + $0x4] sm:$0xc] %vm638, %v633
        %640 = vst.msk [vmem:[#allocation3 + $0x8] sm:$0x1] %vm492, %v635
        %v641 = vpack.c.bf16 %v448, %v448
        %v642 = vld [vmem:[#allocation2] sm:$0xf]
        %v643 = vld [vmem:[#allocation2 + $0x4] sm:$0xf]
        %v644 = vld [vmem:[#allocation2 + $0x8] sm:$0x7]
        %v645 = vld [vmem:[#allocation3] sm:$0xf]
        %v646 = vld [vmem:[#allocation3 + $0x4] sm:$0xf]
        %v647 = vld [vmem:[#allocation3 + $0x8] sm:$0x1]
        %649 = vrot.lane.b32.xlu0 %v641, 120
        %v650 = vpop.permute.xlu0 %649
        %654 = vrot.lane.b32.xlu0 %v642, 120
        %v655 = vpop.permute.xlu0 %654
        %656 = vrot.lane.b32.xlu0 %v643, 120
        %v657 = vpop.permute.xlu0 %656
        %658 = vrot.lane.b32.xlu0 %v644, 120
        %v659 = vpop.permute.xlu0 %658
        %663 = vrot.lane.b32.xlu0 %v645, 120
        %v664 = vpop.permute.xlu0 %663
        %665 = vrot.lane.b32.xlu0 %v646, 120
        %v666 = vpop.permute.xlu0 %665
        %667 = vrot.lane.b32.xlu0 %v647, 120
        %v668 = vpop.permute.xlu0 %667
        %v669 = vunpack.c.l.b16 %v642
        %v670 = vunpack.c.l.b16 %v643
        %v671 = vunpack.c.l.b16 %v644
        %v672 = vpack.c.b16 %v670, %v669
        %v673 = vpack.c.b16 %v671, %v671
        %vm674 = vcmask 64512
        %v676 = vsel %vm674, %v641, 0
        %v679 = vsel %vm674, %v672, 0
        %v682 = vsel %vm674, %v673, 0
        %684 = vmatpush.bf16.xpose.msra.mxu0 0
        %685 = vmatpush.bf16.xpose.msra.mxu0 0
        %686 = vmatpush.bf16.xpose.msra.mxu0 0
        %687 = vmatpush.bf16.xpose.msra.mxu0 0
        %688 = vmatpush.bf16.xpose.msra.mxu0 0
        %689 = vmatpush.bf16.xpose.msra.mxu0 0
        %690 = vmatpush.bf16.xpose.msra.mxu0 %v682
        %691 = vmatpush.bf16.xpose.msra.mxu0 %v679
        %692 = vmatmul.bf16.gmra.mxu0 %v676
        %v693 = vpop.f32.mrf.mxu0
        %v694 = vadd.f32 0.0, %v693
        %v695 = vpop.f32.mrf.mxu0
        %696 = vdwg.mxu0
        %v697 = vunpack.c.l.b16 %v655
        %v698 = vunpack.c.l.b16 %v657
        %v699 = vunpack.c.l.b16 %v659
        %v700 = vpack.c.b16 %v698, %v697
        %v701 = vpack.c.b16 %v699, %v699
        %v703 = vsel %vm674, %v650, 0
        %v706 = vsel %vm674, %v700, 0
        %v709 = vsel %vm674, %v701, 0
        %711 = vmatpush.bf16.xpose.msra.mxu0 0
        %712 = vmatpush.bf16.xpose.msra.mxu0 0
        %713 = vmatpush.bf16.xpose.msra.mxu0 0
        %714 = vmatpush.bf16.xpose.msra.mxu0 0
        %715 = vmatpush.bf16.xpose.msra.mxu0 0
        %716 = vmatpush.bf16.xpose.msra.mxu0 0
        %717 = vmatpush.bf16.xpose.msra.mxu0 %v709
        %718 = vmatpush.bf16.xpose.msra.mxu0 %v706
        %719 = vmatmul.bf16.gmra.mxu0 %v703
        %v720 = vpop.f32.mrf.mxu0
        %v721 = vadd.f32 0.0, %v720
        %v722 = vpop.f32.mrf.mxu0
        %723 = vdwg.mxu0
        %v724 = vld [vmem:[%s375] sm:$0x3]
        %v725 = vunpack.c.0.s8 %v724
        %v726 = vcvt.s32.f32 %v725
        %vm727 = vcmp.eq.f32.partialorder %v726, 0.0
        %v728 = vsel %vm727, 1, 0
        %vm729 = vcmp.eq.s32.totalorder %v728, 1
        %v730 = vsel %vm729, -1e+09, %v694
        %v731 = vsel %vm729, -1e+09, %v721
        %vm732 = vcmask 23552
        %v733 = vsel %vm732, %v730, -inf
        %734 = vmax.xlane.f32.xlu0 %v733
        %v735 = vpop.xlane.xlu0 %734
        %v736 = vsel %vm732, %v731, -inf
        %737 = vmax.xlane.f32.xlu0 %v736
        %v738 = vpop.xlane.xlu0 %737
        %v739 = vsub.f32 %v730, %v735
        %v740 = vsub.f32 %v731, %v738
        %v741 = vmul.f32 %v739, 1.442695
        %v742 = vpow.pop %v741
        %v743 = vmul.f32 %v740, 1.442695
        %v744 = vpow.pop %v743
        %v745 = vsel %vm732, %v742, 0.0
        %746 = vadd.xlane.f32.xlu0 %v745
        %v747 = vpop.xlane.xlu0 %746
        %v748 = vsel %vm732, %v744, 0.0
        %749 = vadd.xlane.f32.xlu0 %v748
        %v750 = vpop.xlane.xlu0 %749
        %vm751 = vcmask 89112
        %v752 = vsel %vm751, %v730, -inf
        %753 = vmax.xlane.f32.xlu0 %v752
        %v754 = vpop.xlane.xlu0 %753
        %v755 = vsel %vm751, %v731, -inf
        %756 = vmax.xlane.f32.xlu0 %v755
        %v757 = vpop.xlane.xlu0 %756
        %v758 = vsub.f32 %v730, %v754
        %v759 = vsub.f32 %v731, %v757
        %v760 = vmul.f32 %v758, 1.442695
        %v761 = vpow.pop %v760
        %v762 = vmul.f32 %v759, 1.442695
        %v763 = vpow.pop %v762
        %766 = vrot.lane.b32.xlu0 %v761, 125
        %v767 = vpop.permute.xlu0 %766
        %768 = vrot.lane.b32.xlu0 %v763, 125
        %v769 = vpop.permute.xlu0 %768
        %v772 = vsel %vm674, %v767, 0.0
        %773 = vadd.xlane.f32.xlu0 %v772
        %v774 = vpop.xlane.xlu0 %773
        %v775 = vsel %vm674, %v769, 0.0
        %776 = vadd.xlane.f32.xlu0 %v775
        %v777 = vpop.xlane.xlu0 %776
        %779 = vset.pattern.permute.xlu0 0
        %780 = vperm.xlu0 %779, %v742
        %v781 = vpop.permute.xlu0 %780
        %784 = vset.pattern.permute.xlu0 0
        %785 = vperm.xlu0 %784, %v744
        %v786 = vpop.permute.xlu0 %785
        %v788 = vmul.f32 %v781, %v761
        %v789 = vmul.f32 %v786, %v763
        %v790 = vmul.f32 %v747, %v774
        %v791 = vmul.f32 %v750, %v777
        %v792 = vrcp.pop %v790
        %v793 = vrcp.pop %v791
        %v794 = vmul.f32 %v788, %v792
        %v795 = vmul.f32 %v789, %v793
        %vm796 = vcmask 121944
        %v797 = vsel %vm796, %v730, -inf
        %798 = vmax.xlane.f32.xlu0 %v797
        %v799 = vpop.xlane.xlu0 %798
        %v800 = vsel %vm796, %v731, -inf
        %801 = vmax.xlane.f32.xlu0 %v800
        %v802 = vpop.xlane.xlu0 %801
        %v803 = vsub.f32 %v730, %v799
        %v804 = vsub.f32 %v731, %v802
        %v805 = vmul.f32 %v803, 1.442695
        %v806 = vpow.pop %v805
        %v807 = vmul.f32 %v804, 1.442695
        %v808 = vpow.pop %v807
        %811 = vrot.lane.b32.xlu0 %v806, 117
        %v812 = vpop.permute.xlu0 %811
        %813 = vrot.lane.b32.xlu0 %v808, 117
        %v814 = vpop.permute.xlu0 %813
        %vm817 = vcmask 31744
        %v818 = vsel %vm817, %v812, 0.0
        %819 = vadd.xlane.f32.xlu0 %v818
        %v820 = vpop.xlane.xlu0 %819
        %v821 = vsel %vm817, %v814, 0.0
        %822 = vadd.xlane.f32.xlu0 %v821
        %v823 = vpop.xlane.xlu0 %822
        %824 = vset.pattern.permute.xlu0 1
        %825 = vperm.xlu0 %824, %v742
        %v826 = vpop.permute.xlu0 %825
        %828 = vset.pattern.permute.xlu0 1
        %829 = vperm.xlu0 %828, %v744
        %v830 = vpop.permute.xlu0 %829
        %v832 = vmul.f32 %v826, %v806
        %v833 = vmul.f32 %v830, %v808
        %v834 = vmul.f32 %v747, %v820
        %v835 = vmul.f32 %v750, %v823
        %v836 = vrcp.pop %v834
        %v837 = vrcp.pop %v835
        %v838 = vmul.f32 %v832, %v836
        %v839 = vmul.f32 %v833, %v837
        %vm840 = vcmask 171128
        %v841 = vsel %vm840, %v730, -inf
        %842 = vmax.xlane.f32.xlu0 %v841
        %v843 = vpop.xlane.xlu0 %842
        %v844 = vsel %vm840, %v731, -inf
        %845 = vmax.xlane.f32.xlu0 %v844
        %v846 = vpop.xlane.xlu0 %845
        %v847 = vsub.f32 %v730, %v843
        %v848 = vsub.f32 %v731, %v846
        %v849 = vmul.f32 %v847, 1.442695
        %v850 = vpow.pop %v849
        %v851 = vmul.f32 %v848, 1.442695
        %v852 = vpow.pop %v851
        %855 = vrot.lane.b32.xlu0 %v850, 113
        %v856 = vpop.permute.xlu0 %855
        %857 = vrot.lane.b32.xlu0 %v852, 113
        %v858 = vpop.permute.xlu0 %857
        %vm861 = vcmask 48128
        %v862 = vsel %vm861, %v856, 0.0
        %863 = vadd.xlane.f32.xlu0 %v862
        %v864 = vpop.xlane.xlu0 %863
        %v865 = vsel %vm861, %v858, 0.0
        %866 = vadd.xlane.f32.xlu0 %v865
        %v867 = vpop.xlane.xlu0 %866
        %868 = vset.pattern.permute.xlu0 2
        %869 = vperm.xlu0 %868, %v742
        %v870 = vpop.permute.xlu0 %869
        %872 = vset.pattern.permute.xlu0 2
        %873 = vperm.xlu0 %872, %v744
        %v874 = vpop.permute.xlu0 %873
        %v876 = vmul.f32 %v870, %v850
        %v877 = vmul.f32 %v874, %v852
        %v878 = vmul.f32 %v747, %v864
        %v879 = vmul.f32 %v750, %v867
        %v880 = vrcp.pop %v878
        %v881 = vrcp.pop %v879
        %v882 = vmul.f32 %v876, %v880
        %v883 = vmul.f32 %v877, %v881
        %886 = vrot.lane.b32.xlu0 %v794, 125
        %v887 = vpop.permute.xlu0 %886
        %888 = vrot.lane.b32.xlu0 %v795, 125
        %v889 = vpop.permute.xlu0 %888
        %894 = vrot.lane.b32.xlu0 %v838, 125
        %v895 = vpop.permute.xlu0 %894
        %896 = vrot.lane.b32.xlu0 %v839, 125
        %v897 = vpop.permute.xlu0 %896
        %902 = vrot.lane.b32.xlu0 %v882, 125
        %v903 = vpop.permute.xlu0 %902
        %904 = vrot.lane.b32.xlu0 %v883, 125
        %v905 = vpop.permute.xlu0 %904
        %v908 = vsel %vm674, %v887, %v895
        %v909 = vsel %vm674, %v889, %v897
        %vm910 = vcmask 97280
        %v911 = vsel %vm910, %v908, %v903
        %v912 = vsel %vm910, %v909, %v905
        %vm913 = vcmask 146432
        %v914 = vsel %vm913, %v911, 0.0
        %v915 = vsel %vm913, %v912, 0.0
        %v916 = vpack.c.bf16 %v914, %v914
        %v917 = vpack.c.bf16 %v915, %v915
        %918 = vst [vmem:[%s362] sm:$0xf] %v916
        %919 = vst [vmem:[%s362 + $0x4] sm:$0xf] %v917
        %v920 = vunpack.c.l.b16 %v645
        %v921 = vunpack.c.l.b16 %v646
        %v922 = vunpack.c.l.b16 %v647
        %v923 = vpack.c.b16 %v921, %v920
        %v924 = vpack.c.b16 %v922, %v922
        %v927 = vsel %vm913, %v916, 0
        %vm929 = vcmask 1040384
        %v931 = vsel %vm929, %v924, 0
        %933 = vmatpush.bf16.msra.mxu0 0
        %934 = vmatpush.bf16.msra.mxu0 0
        %935 = vmatpush.bf16.msra.mxu0 0
        %936 = vmatpush.bf16.msra.mxu0 0
        %937 = vmatpush.bf16.msra.mxu0 0
        %938 = vmatpush.bf16.msra.mxu0 0
        %939 = vmatpush.bf16.msra.mxu0 %v931
        %940 = vmatpush.bf16.msra.mxu0 %v923
        %941 = vmatmul.bf16.gmra.mxu0 %v927
        %v942 = vpop.f32.mrf.mxu0
        %v943 = vadd.f32 0.0, %v942
        %v944 = vpop.f32.mrf.mxu0
        %945 = vdwg.mxu0
        %v946 = vunpack.c.l.b16 %v664
        %v947 = vunpack.c.l.b16 %v666
        %v948 = vunpack.c.l.b16 %v668
        %v949 = vpack.c.b16 %v947, %v946
        %v950 = vpack.c.b16 %v948, %v948
        %v953 = vsel %vm913, %v917, 0
        %v956 = vsel %vm929, %v950, 0
        %958 = vmatpush.bf16.msra.mxu0 0
        %959 = vmatpush.bf16.msra.mxu0 0
        %960 = vmatpush.bf16.msra.mxu0 0
        %961 = vmatpush.bf16.msra.mxu0 0
        %962 = vmatpush.bf16.msra.mxu0 0
        %963 = vmatpush.bf16.msra.mxu0 0
        %964 = vmatpush.bf16.msra.mxu0 %v956
        %965 = vmatpush.bf16.msra.mxu0 %v949
        %966 = vmatmul.bf16.gmra.mxu0 %v953
        %v967 = vpop.f32.mrf.mxu0
        %v968 = vadd.f32 0.0, %v967
        %v969 = vpop.f32.mrf.mxu0
        %970 = vdwg.mxu0
        %972 = vrot.lane.b32.xlu0 %v968, 8
        %v973 = vpop.permute.xlu0 %972
        %v975 = vsel %vm674, %v943, %v973
        %v976 = vpack.c.bf16 %v975, %v975
        %v977 = vld [vmem:[%s7] sm:$0xf]
        %v978 = vld [vmem:[%s7 + $0x4] sm:$0xf]
        %v981 = vunpack.c.l.b16 %v977
        %v982 = vunpack.c.l.b16 %v978
        %v983 = vpack.c.b16 %v982, %v981
        %vm985 = vcmask 130048
        %v987 = vsel %vm985, %v976, 0
        %989 = vmatpush.bf16.msra.mxu0 0
        %990 = vmatpush.bf16.msra.mxu0 0
        %991 = vmatpush.bf16.msra.mxu0 0
        %992 = vmatpush.bf16.msra.mxu0 0
        %993 = vmatpush.bf16.msra.mxu0 0
        %994 = vmatpush.bf16.msra.mxu0 0
        %995 = vmatpush.bf16.msra.mxu0 0
        %996 = vmatpush.bf16.msra.mxu0 %v983
        %997 = vmatmul.bf16.gmra.mxu0 %v987
        %v998 = vpop.f32.mrf.mxu0
        %v999 = vadd.f32 %v379, %v998
        %v1000 = vpop.f32.mrf.mxu0
        %1001 = vdwg.mxu0
        %1002 = vst [vmem:[%s355] sm:$0xff] %v999
        %s1003 = sand.u32 %s218, 1
        %s1004 = scalar_lea.sflag [#allocation5], %s1003
        %s1005 = sand.u32 %s218, 1
        %s1006 = smul.addr %s1005, 8
        %s1007 = scalar_lea.vmem [#allocation4], %s1006
        %s1008 = sand.u32 %s244, 1
        %s1009 = scalar_lea.sflag [#allocation7], %s1008
        %s1010 = sand.u32 %s244, 1
        %s1011 = smul.addr %s1010, 8
        %s1012 = scalar_lea.vmem [#allocation6], %s1011
        // Predicated region
        $region53: #{selector_forward.1} parent=51 // pred_check
          %p1013 = pneg %p228
        $region54: #{selector_forward.1} parent=51 // pred_check_branch
          %1015 = sbr.rel (%p1013) target = $region56
        $region55: #{selector_forward.1} parent=51 // pred_region
          %1017 = vsyncadd %s1004, 0
          %s1018 = smul.addr %s27, 8
          %s1019 = scalar_lea.hbm %s8, %s1018
          %s1021 = sshll.u32 %s1007, 4
          %s1022 = int_to_ptr.vmem [resolvable:$true] %s1021
          %s1023 = sshll.u32 %s1019, 4
          %s1024 = int_to_ptr.hbm [resolvable:$true] %s1023
          %1026 = dma.vmem_to_hbm [thread:$0]  %s1022, 128, %s1024, %s1004
        $region56: #{selector_forward.1} parent=51 // pred_fallthru
          _
        // Predicated region
        $region57: #{selector_forward.1} parent=51 // pred_check
          %p1027 = pneg %p254
        $region58: #{selector_forward.1} parent=51 // pred_check_branch
          %1029 = sbr.rel (%p1027) target = $region60
        $region59: #{selector_forward.1} parent=51 // pred_region
          %1031 = vsyncadd %s1009, 0
          %s1032 = smul.addr %s27, 2
          %s1033 = smul.addr %s1032, 4
          %s1034 = scalar_lea.hbm %s9, %s1033
          %s1035 = sshll.u32 %s1012, 4
          %s1036 = int_to_ptr.vmem [resolvable:$true] %s1035
          %s1037 = sshll.u32 %s1034, 4
          %s1038 = int_to_ptr.hbm [resolvable:$true] %s1037
          %1043 = dma.vmem_to_hbm [thread:$0]  %s1036, 128, %s1038, %s1009, 64, 64, 4
        $region60: #{selector_forward.1} parent=51 // pred_fallthru
          _
      $region52: #{selector_forward.1} parent=5 // pred_fallthru
        _
      %p1044 = scmp.le.s32.totalorder 2, %s22
      // Predicated region
      $region61: #{selector_forward.1} parent=5 // pred_check
        %p1045 = pneg %p1044
      $region62: #{selector_forward.1} parent=5 // pred_check_branch
        %1047 = sbr.rel (%p1045) target = $region64
      $region63: #{selector_forward.1} parent=5 // pred_region
        %s1048 = ssub.s32 %s22, 2
        // Predicated region
        $region65: #{selector_forward.1} parent=63 // pred_check
          %p1049 = pneg %p234
        $region66: #{selector_forward.1} parent=63 // pred_check_branch
          %1051 = sbr.rel (%p1049) target = $region68
        $region67: #{selector_forward.1} parent=63 // pred_region
          %s1052 = sand.u32 %s219, 1
          %s1053 = scalar_lea.sflag [#allocation5], %s1052
          %s1054 = sand.u32 %s219, 1
          %s1055 = smul.addr %s1054, 8
          %s1056 = scalar_lea.vmem [#allocation4], %s1055
          %1058 = dma.done %s1053, 128
        $region68: #{selector_forward.1} parent=63 // pred_fallthru
          _
        // Predicated region
        $region69: #{selector_forward.1} parent=63 // pred_check
          %p1059 = pneg %p260
        $region70: #{selector_forward.1} parent=63 // pred_check_branch
          %1061 = sbr.rel (%p1059) target = $region72
        $region71: #{selector_forward.1} parent=63 // pred_region
          %s1062 = sand.u32 %s245, 1
          %s1063 = scalar_lea.sflag [#allocation7], %s1062
          %s1064 = sand.u32 %s245, 1
          %s1065 = smul.addr %s1064, 8
          %s1066 = scalar_lea.vmem [#allocation6], %s1065
          %1068 = dma.done %s1063, 128
        $region72: #{selector_forward.1} parent=63 // pred_fallthru
          _
      $region64: #{selector_forward.1} parent=5 // pred_fallthru
        _
    $region6: #{selector_forward.1} parent=1 // loop_footer
      %s26 = sadd.s32 1, %s22
    $region7: #{selector_forward.1} parent=1 // loop_footer_branch
      %21 = sbr.rel target = $region3
    $region8: #{selector_forward.1} parent=1 // loop_exit
      _
    %1069 = vsyncpa [#allocation5], 1
    %s1070 = scalar_lea.sflag [#allocation5], 1
    %1071 = vsyncpa %s1070, 1
    %1072 = vsyncpa [#allocation7], 1
    %s1073 = scalar_lea.sflag [#allocation7], 1
    %1074 = vsyncpa %s1073, 1

</llo_original>
